<compile_context>
chip_gen: v7x
topology: tpu7x:2x2x1
jax: 0.10.0
libtpu: 0.0.40
codegen_flags: <defaults>
</compile_context>

<pallas_src>
import functools
import math

import jax
import jax.numpy as jnp
from jax import lax
from jax.experimental import pallas as pl
from jax.experimental.pallas import tpu as pltpu


# Contract x:(M, K) with a PyTorch-layout weight w:(N, K) -> (M, N); no
# transpose is ever fed to the MXU.
_NT = (((1,), (1,)), ((), ()))


def _project(x_bf16, w_ref, b_ref):
    """x @ W^T + b with bf16 operands on the MXU and f32 accumulation."""
    acc = lax.dot_general(x_bf16, w_ref[...], _NT,
                          preferred_element_type=jnp.float32)
    return acc + b_ref[...]          # (1, D) f32 bias, sublane broadcast


def _mha_body(xq_ref, xk_ref, xv_ref,
              wq_ref, wk_ref, wv_ref, wo_ref,
              bq_ref, bk_ref, bv_ref, bo_ref,
              mask_ref, o_ref, ctx_ref,
              *, num_head, reduced_dim, scale, causal):
    bt, seq, dim = xq_ref.shape
    m = bt * seq

    # ---- QKV projections on the folded (Bt*S, D) batch ---------------------
    xq = xq_ref[...].reshape(m, dim).astype(jnp.bfloat16)
    xk = xk_ref[...].reshape(m, dim).astype(jnp.bfloat16)
    xv = xv_ref[...].reshape(m, dim).astype(jnp.bfloat16)

    q = _project(xq, wq_ref, bq_ref) * scale     # scale folded into Q once
    k = _project(xk, wk_ref, bk_ref)
    v = _project(xv, wv_ref, bv_ref)

    qb = q.astype(jnp.bfloat16)                  # matmul operands in bf16
    kb = k.astype(jnp.bfloat16)
    vb = v.astype(jnp.bfloat16)

    # ---- additive mask, built / loaded ONCE (hoisted out of the head loop) --
    if causal:
        rows = lax.broadcasted_iota(jnp.int32, (seq, seq), 0)
        cols = lax.broadcasted_iota(jnp.int32, (seq, seq), 1)
        add_mask = jnp.where(rows >= cols, 0.0, -1e9).astype(jnp.float32)
        add_mask = jnp.broadcast_to(add_mask[None], (bt, seq, seq))
    elif mask_ref is not None:
        add_mask = jnp.broadcast_to(mask_ref[...], (bt, seq, seq))
    else:
        add_mask = None

    # ---- per-head attention, batched over the folded batch dim -------------
    for h in range(num_head):
        lo = h * reduced_dim
        hi = lo + reduced_dim
        qh = qb[:, lo:hi].reshape(bt, seq, reduced_dim)
        kh = kb[:, lo:hi].reshape(bt, seq, reduced_dim)
        vh = vb[:, lo:hi].reshape(bt, seq, reduced_dim)

        s = jnp.einsum("bqd,bkd->bqk", qh, kh,
                       preferred_element_type=jnp.float32)      # (Bt, S, S) f32
        if add_mask is not None:
            s = s + add_mask
        s = s - jnp.max(s, axis=-1, keepdims=True)               # f32 softmax
        p = jnp.exp(s)
        denom = jnp.sum(p, axis=-1, keepdims=True)
        p = p * pl.reciprocal(denom, approx=True)

        ctx = jnp.einsum("bqk,bkd->bqd", p.astype(jnp.bfloat16), vh,
                         preferred_element_type=jnp.float32)     # (Bt, S, d) f32
        # heads assembled in a VMEM slab (no jnp.concatenate shuffle tree)
        ctx_ref[:, lo:hi] = ctx.reshape(m, reduced_dim)

    # ---- output projection on the full (Bt*S, D) context slab ---------------
    ctx_all = ctx_ref[...].astype(jnp.bfloat16)
    out = lax.dot_general(ctx_all, wo_ref[...], _NT,
                          preferred_element_type=jnp.float32) + bo_ref[...]
    o_ref[...] = out.reshape(bt, seq, dim).astype(o_ref.dtype)


def _mha_kernel_nomask(xq_ref, xk_ref, xv_ref, wq_ref, wk_ref, wv_ref, wo_ref,
                       bq_ref, bk_ref, bv_ref, bo_ref, o_ref, ctx_ref,
                       *, num_head, reduced_dim, scale, causal):
    _mha_body(xq_ref, xk_ref, xv_ref, wq_ref, wk_ref, wv_ref, wo_ref,
              bq_ref, bk_ref, bv_ref, bo_ref, None, o_ref, ctx_ref,
              num_head=num_head, reduced_dim=reduced_dim, scale=scale,
              causal=causal)


def _mha_kernel_mask(xq_ref, xk_ref, xv_ref, wq_ref, wk_ref, wv_ref, wo_ref,
                     bq_ref, bk_ref, bv_ref, bo_ref, mask_ref, o_ref, ctx_ref,
                     *, num_head, reduced_dim, scale):
    _mha_body(xq_ref, xk_ref, xv_ref, wq_ref, wk_ref, wv_ref, wo_ref,
              bq_ref, bk_ref, bv_ref, bo_ref, mask_ref, o_ref, ctx_ref,
              num_head=num_head, reduced_dim=reduced_dim, scale=scale,
              causal=False)


def _pick_batch_tile(B, S, D, mask_is_per_batch):
    """Largest batch tile whose per-step working set fits a conservative budget."""
    budget = 24 * 1024 * 1024
    est = 0
    for bt in range(B, 0, -1):
        if B % bt:
            continue
        m = bt * S
        est = (3 * 2 * m * D * 4                       # double-buffered q/k/v inputs (f32)
               + 2 * m * D * 4                          # double-buffered output block
               + (2 * bt * S * S * 4 if mask_is_per_batch else 2 * S * S * 4)
               + 4 * D * D * 2 + 4 * D * 4              # resident bf16 weights + f32 biases
               + m * D * 4                              # ctx scratch slab
               + 4 * m * D * 4                          # q/k/v f32 + bf16 copies (rough)
               + 4 * m * S * 4)                         # score / softmax intermediates (rough)
        if est <= budget:
            return bt, est
    return 1, est


def multi_head_attention(params, q_tensor, k_tensor, v_tensor,
                         num_head, reduced_dim, mask=None, causal=False):
    """Fused MHA forward matching the PyTorch module semantics.

    q/k/v_tensor: (B, S, D); weights in PyTorch (out, in) layout; biases (D,).
    mask: optional, 0 = masked position, broadcastable to (B, 1, S, S).
    causal=True generates the causal mask in-kernel (no mask tensor needed).
    """
    B, S, D = q_tensor.shape
    assert num_head * reduced_dim == D
    assert not (causal and mask is not None), "pass either causal=True or a mask"
    scale = 1.0 / math.sqrt(reduced_dim)

    # ---- normalise the optional user mask to an additive (1|B, S, S) tensor --
    mask_add = None
    mask_shared = True
    if mask is not None:
        m_arr = jnp.asarray(mask)
        if m_arr.ndim == 2:
            m_arr = m_arr[None]
        elif m_arr.ndim == 4:          # (B|1, 1, S, S): heads share the mask
            m_arr = m_arr[:, 0]
        mask_add = jnp.where(m_arr == 0, jnp.float32(-1e9), jnp.float32(0.0))
        mask_shared = (mask_add.shape[0] == 1)
        if mask_shared:
            mask_add = jnp.broadcast_to(mask_add, (1, S, S))
        else:
            mask_add = jnp.broadcast_to(mask_add, (B, S, S))

    Bt, est = _pick_batch_tile(B, S, D, mask_is_per_batch=(mask_add is not None
                                                           and not mask_shared))
    vmem_limit = int(min(max(2 * est, 16 * 1024 * 1024), 64 * 1024 * 1024))

    x_spec = pl.BlockSpec((Bt, S, D), lambda i: (i, 0, 0))
    w_spec = pl.BlockSpec((D, D), lambda i: (0, 0))     # resident across grid
    b_spec = pl.BlockSpec((1, D), lambda i: (0, 0))

    bf16 = lambda w: w.astype(jnp.bfloat16)
    f32b = lambda b: b.reshape(1, D).astype(jnp.float32)
    args = [q_tensor, k_tensor, v_tensor,
            bf16(params["wq"]), bf16(params["wk"]),
            bf16(params["wv"]), bf16(params["wo"]),
            f32b(params["bq"]), f32b(params["bk"]),
            f32b(params["bv"]), f32b(params["bo"])]
    in_specs = [x_spec, x_spec, x_spec,
                w_spec, w_spec, w_spec, w_spec,
                b_spec, b_spec, b_spec, b_spec]

    if mask_add is not None:
        args.append(mask_add)
        if mask_shared:   # fetched once, stays resident (index never changes)
            in_specs.append(pl.BlockSpec((1, S, S), lambda i: (0, 0, 0)))
        else:
            in_specs.append(pl.BlockSpec((Bt, S, S), lambda i: (i, 0, 0)))
        kernel = functools.partial(_mha_kernel_mask, num_head=num_head,
                                   reduced_dim=reduced_dim, scale=scale)
    else:
        kernel = functools.partial(_mha_kernel_nomask, num_head=num_head,
                                   reduced_dim=reduced_dim, scale=scale,
                                   causal=causal)

    return pl.pallas_call(
        kernel,
        out_shape=jax.ShapeDtypeStruct((B, S, D), q_tensor.dtype),
        grid=(B // Bt,),
        in_specs=in_specs,
        out_specs=pl.BlockSpec((Bt, S, D), lambda i: (i, 0, 0)),
        scratch_shapes=[pltpu.VMEM((Bt * S, D), jnp.float32)],
        compiler_params=pltpu.CompilerParams(
            dimension_semantics=("parallel",),
            vmem_limit_bytes=vmem_limit),
    )(*args)


# ----------------------------------------------------------------------------
# Deterministic parameter init (PyTorch nn.Linear-style uniform).
# ----------------------------------------------------------------------------
def init_params(key, model_dim):
    bound = 1.0 / math.sqrt(model_dim)
    keys = jax.random.split(key, 8)
    u = lambda k, shape: jax.random.uniform(
        k, shape, dtype=jnp.float32, minval=-bound, maxval=bound)
    return {
        "wq": u(keys[0], (model_dim, model_dim)), "bq": u(keys[1], (model_dim,)),
        "wk": u(keys[2], (model_dim, model_dim)), "bk": u(keys[3], (model_dim,)),
        "wv": u(keys[4], (model_dim, model_dim)), "bv": u(keys[5], (model_dim,)),
        "wo": u(keys[6], (model_dim, model_dim)), "bo": u(keys[7], (model_dim,)),
    }


# ----------------------------------------------------------------------------
# Pure-JAX f32 reference of the same math (PyTorch module semantics).
# ----------------------------------------------------------------------------
def ref_mha(params, q, k, v, H, d, mask=None):
    B, S, D = q.shape
    lq = q @ params["wq"].T + params["bq"]
    lk = k @ params["wk"].T + params["bk"]
    lv = v @ params["wv"].T + params["bv"]
    sh = lambda x: x.reshape(B, S, H, d).transpose(0, 2, 1, 3)
    qp, kp, vp = sh(lq), sh(lk), sh(lv)
    sc = jnp.einsum("bhqd,bhkd->bhqk", qp, kp) / math.sqrt(d)
    if mask is not None:
        m = jnp.broadcast_to(jnp.asarray(mask), (B, 1, S, S))
        sc = jnp.where(m == 0, jnp.float32(-1e9), sc)
    p = jax.nn.softmax(sc, axis=-1)
    o = jnp.einsum("bhqk,bhkd->bhqd", p, vp)
    o = o.transpose(0, 2, 1, 3).reshape(B, S, D)
    return o @ params["wo"].T + params["bo"]


if __name__ == "__main__":
    # Config: model_dim=32, num_attention_head=4, reduced_dim=8  (4 * 8 == 32)
    B, S, D = 2, 8, 32
    H, d = 4, 8

    key = jax.random.PRNGKey(0)
    kparam, kq, kk, kv = jax.random.split(key, 4)
    params = init_params(kparam, D)

    q = jax.random.normal(kq, (B, S, D), dtype=jnp.float32)
    k = jax.random.normal(kk, (B, S, D), dtype=jnp.float32)
    v = jax.random.normal(kv, (B, S, D), dtype=jnp.float32)

    # tolerances vs the f32 reference loosened for bf16 MXU operands + the
    # approximate EUP reciprocal in the softmax denominator
    TOL = dict(atol=3e-2, rtol=3e-2)

    # --- unmasked path --------------------------------------------------------
    out = multi_head_attention(params, q, k, v, num_head=H, reduced_dim=d)
    out = jax.block_until_ready(out)
    assert out.shape == (B, S, D)
    ref = ref_mha(params, q, k, v, H, d)
    assert jnp.allclose(out, ref, **TOL), float(jnp.max(jnp.abs(out - ref)))

    # --- causal path, mask generated in-kernel (no (B,S,S) HBM mask at all) ---
    causal_mask = jnp.tril(jnp.ones((S, S), jnp.float32)).reshape(1, 1, S, S)
    out_c = multi_head_attention(params, q, k, v, num_head=H, reduced_dim=d,
                                 causal=True)
    out_c = jax.block_until_ready(out_c)
    ref_c = ref_mha(params, q, k, v, H, d, mask=causal_mask)
    assert jnp.allclose(out_c, ref_c, **TOL), float(jnp.max(jnp.abs(out_c - ref_c)))

    # --- user-provided batch-shared mask (kept (1,S,S), resident in VMEM) -----
    out_m = multi_head_attention(params, q, k, v, num_head=H, reduced_dim=d,
                                 mask=causal_mask)
    out_m = jax.block_until_ready(out_m)
    assert jnp.allclose(out_m, ref_c, **TOL), float(jnp.max(jnp.abs(out_m - ref_c)))

    # --- user-provided per-batch padding mask (B,1,S,S) ------------------------
    key_valid = jnp.array([[1.0] * 8, [1.0] * 6 + [0.0] * 2], dtype=jnp.float32)
    pad_mask = jnp.broadcast_to(key_valid[:, None, None, :], (B, 1, S, S))
    out_p = multi_head_attention(params, q, k, v, num_head=H, reduced_dim=d,
                                 mask=pad_mask)
    out_p = jax.block_until_ready(out_p)
    ref_p = ref_mha(params, q, k, v, H, d, mask=pad_mask)
    assert jnp.allclose(out_p, ref_p, **TOL), float(jnp.max(jnp.abs(out_p - ref_p)))

    print("KERNEL_OK")
</pallas_src>

<mosaic_0001>
module attributes {stable_mosaic.version = 11 : i64} {
  func.func @_mha_kernel_nomask(%arg0: i32, %arg1: memref<2x8x32xf32, #tpu.memory_space<vmem>>, %arg2: memref<2x8x32xf32, #tpu.memory_space<vmem>>, %arg3: memref<2x8x32xf32, #tpu.memory_space<vmem>>, %arg4: memref<32x32xbf16, #tpu.memory_space<vmem>>, %arg5: memref<32x32xbf16, #tpu.memory_space<vmem>>, %arg6: memref<32x32xbf16, #tpu.memory_space<vmem>>, %arg7: memref<32x32xbf16, #tpu.memory_space<vmem>>, %arg8: memref<1x32xf32, #tpu.memory_space<vmem>>, %arg9: memref<1x32xf32, #tpu.memory_space<vmem>>, %arg10: memref<1x32xf32, #tpu.memory_space<vmem>>, %arg11: memref<1x32xf32, #tpu.memory_space<vmem>>, %arg12: memref<2x8x32xf32, #tpu.memory_space<vmem>>, %arg13: memref<16x32xf32, #tpu.memory_space<vmem>>) attributes {dimension_semantics = [#tpu.dimension_semantics<parallel>], iteration_bounds = array<i64: 1>, scalar_prefetch = 0 : i64, scratch_operands = 1 : i64, tpu.core_type = #tpu.core_type<tc>, window_params = [{transform_indices = @transform_0, window_bounds = array<i64: 2, 8, 32>}, {transform_indices = @transform_1, window_bounds = array<i64: 2, 8, 32>}, {transform_indices = @transform_2, window_bounds = array<i64: 2, 8, 32>}, {pipeline_mode = #tpu.pipeline_mode<synchronous>, transform_indices = @transform_3, window_bounds = array<i64: 32, 32>}, {pipeline_mode = #tpu.pipeline_mode<synchronous>, transform_indices = @transform_4, window_bounds = array<i64: 32, 32>}, {pipeline_mode = #tpu.pipeline_mode<synchronous>, transform_indices = @transform_5, window_bounds = array<i64: 32, 32>}, {pipeline_mode = #tpu.pipeline_mode<synchronous>, transform_indices = @transform_6, window_bounds = array<i64: 32, 32>}, {pipeline_mode = #tpu.pipeline_mode<synchronous>, transform_indices = @transform_7, window_bounds = array<i64: 1, 32>}, {pipeline_mode = #tpu.pipeline_mode<synchronous>, transform_indices = @transform_8, window_bounds = array<i64: 1, 32>}, {pipeline_mode = #tpu.pipeline_mode<synchronous>, transform_indices = @transform_9, window_bounds = array<i64: 1, 32>}, {pipeline_mode = #tpu.pipeline_mode<synchronous>, transform_indices = @transform_10, window_bounds = array<i64: 1, 32>}, {transform_indices = @transform_11, window_bounds = array<i64: 2, 8, 32>}]} {
    %c0 = arith.constant 0 : index
    %c0_0 = arith.constant 0 : index
    %c0_1 = arith.constant 0 : index
    %0 = vector.load %arg1[%c0, %c0_0, %c0_1] : memref<2x8x32xf32, #tpu.memory_space<vmem>>, vector<2x8x32xf32>
    %1 = vector.shape_cast %0 : vector<2x8x32xf32> to vector<16x32xf32>
    %2 = arith.truncf %1 : vector<16x32xf32> to vector<16x32xbf16>
    %c0_2 = arith.constant 0 : index
    %c0_3 = arith.constant 0 : index
    %c0_4 = arith.constant 0 : index
    %3 = vector.load %arg2[%c0_2, %c0_3, %c0_4] : memref<2x8x32xf32, #tpu.memory_space<vmem>>, vector<2x8x32xf32>
    %4 = vector.shape_cast %3 : vector<2x8x32xf32> to vector<16x32xf32>
    %5 = arith.truncf %4 : vector<16x32xf32> to vector<16x32xbf16>
    %c0_5 = arith.constant 0 : index
    %c0_6 = arith.constant 0 : index
    %c0_7 = arith.constant 0 : index
    %6 = vector.load %arg3[%c0_5, %c0_6, %c0_7] : memref<2x8x32xf32, #tpu.memory_space<vmem>>, vector<2x8x32xf32>
    %7 = vector.shape_cast %6 : vector<2x8x32xf32> to vector<16x32xf32>
    %8 = arith.truncf %7 : vector<16x32xf32> to vector<16x32xbf16>
    %c0_8 = arith.constant 0 : index
    %c0_9 = arith.constant 0 : index
    %9 = vector.load %arg4[%c0_8, %c0_9] : memref<32x32xbf16, #tpu.memory_space<vmem>>, vector<32x32xbf16>
    %cst = arith.constant dense<0.000000e+00> : vector<16x32xf32>
    %10 = tpu.matmul %2, %9, %cst {dimension_numbers = #tpu.dot_dimension_numbers<[1], [1], [0], [0], [0, 0, 1, 0], [], []>} : vector<16x32xbf16>, vector<32x32xbf16>, vector<16x32xf32> -> vector<16x32xf32>
    %c0_10 = arith.constant 0 : index
    %c0_11 = arith.constant 0 : index
    %11 = vector.load %arg8[%c0_10, %c0_11] : memref<1x32xf32, #tpu.memory_space<vmem>>, vector<1x32xf32>
    %12 = vector.broadcast %11 : vector<1x32xf32> to vector<16x32xf32>
    %13 = arith.addf %10, %12 : vector<16x32xf32>
    %cst_12 = arith.constant 0.353553385 : f32
    %14 = vector.broadcast %cst_12 : f32 to vector<16x32xf32>
    %15 = arith.mulf %13, %14 : vector<16x32xf32>
    %c0_13 = arith.constant 0 : index
    %c0_14 = arith.constant 0 : index
    %16 = vector.load %arg5[%c0_13, %c0_14] : memref<32x32xbf16, #tpu.memory_space<vmem>>, vector<32x32xbf16>
    %cst_15 = arith.constant dense<0.000000e+00> : vector<16x32xf32>
    %17 = tpu.matmul %5, %16, %cst_15 {dimension_numbers = #tpu.dot_dimension_numbers<[1], [1], [0], [0], [0, 0, 1, 0], [], []>} : vector<16x32xbf16>, vector<32x32xbf16>, vector<16x32xf32> -> vector<16x32xf32>
    %c0_16 = arith.constant 0 : index
    %c0_17 = arith.constant 0 : index
    %18 = vector.load %arg9[%c0_16, %c0_17] : memref<1x32xf32, #tpu.memory_space<vmem>>, vector<1x32xf32>
    %19 = vector.broadcast %18 : vector<1x32xf32> to vector<16x32xf32>
    %20 = arith.addf %17, %19 : vector<16x32xf32>
    %c0_18 = arith.constant 0 : index
    %c0_19 = arith.constant 0 : index
    %21 = vector.load %arg6[%c0_18, %c0_19] : memref<32x32xbf16, #tpu.memory_space<vmem>>, vector<32x32xbf16>
    %cst_20 = arith.constant dense<0.000000e+00> : vector<16x32xf32>
    %22 = tpu.matmul %8, %21, %cst_20 {dimension_numbers = #tpu.dot_dimension_numbers<[1], [1], [0], [0], [0, 0, 1, 0], [], []>} : vector<16x32xbf16>, vector<32x32xbf16>, vector<16x32xf32> -> vector<16x32xf32>
    %c0_21 = arith.constant 0 : index
    %c0_22 = arith.constant 0 : index
    %23 = vector.load %arg10[%c0_21, %c0_22] : memref<1x32xf32, #tpu.memory_space<vmem>>, vector<1x32xf32>
    %24 = vector.broadcast %23 : vector<1x32xf32> to vector<16x32xf32>
    %25 = arith.addf %22, %24 : vector<16x32xf32>
    %26 = arith.truncf %15 : vector<16x32xf32> to vector<16x32xbf16>
    %27 = arith.truncf %20 : vector<16x32xf32> to vector<16x32xbf16>
    %28 = arith.truncf %25 : vector<16x32xf32> to vector<16x32xbf16>
    %29 = vector.extract_strided_slice %26 {offsets = [0, 0], sizes = [16, 8], strides = [1, 1]} : vector<16x32xbf16> to vector<16x8xbf16>
    %30 = vector.shape_cast %29 : vector<16x8xbf16> to vector<2x8x8xbf16>
    %31 = vector.extract_strided_slice %27 {offsets = [0, 0], sizes = [16, 8], strides = [1, 1]} : vector<16x32xbf16> to vector<16x8xbf16>
    %32 = vector.shape_cast %31 : vector<16x8xbf16> to vector<2x8x8xbf16>
    %33 = vector.extract_strided_slice %28 {offsets = [0, 0], sizes = [16, 8], strides = [1, 1]} : vector<16x32xbf16> to vector<16x8xbf16>
    %34 = vector.shape_cast %33 : vector<16x8xbf16> to vector<2x8x8xbf16>
    "tpu.trace_start"() <{level = 10 : i32, message = "bqd,bkd->bqk"}> : () -> ()
    %cst_23 = arith.constant dense<0.000000e+00> : vector<2x8x8xf32>
    %35 = tpu.matmul %30, %32, %cst_23 {dimension_numbers = #tpu.dot_dimension_numbers<[2], [2], [1], [1], [0, 0, 0, 1, 1, 1], [0], [0]>} : vector<2x8x8xbf16>, vector<2x8x8xbf16>, vector<2x8x8xf32> -> vector<2x8x8xf32>
    "tpu.trace_stop"() : () -> ()
    %cst_24 = arith.constant dense<0xFF800000> : vector<2x8xf32>
    %36 = vector.multi_reduction <maximumf>, %35, %cst_24 [2] : vector<2x8x8xf32> to vector<2x8xf32>
    %37 = vector.shape_cast %36 : vector<2x8xf32> to vector<2x8x1xf32>
    %38 = vector.broadcast %37 : vector<2x8x1xf32> to vector<2x8x8xf32>
    %39 = arith.subf %35, %38 : vector<2x8x8xf32>
    %40 = math.exp %39 : vector<2x8x8xf32>
    %cst_25 = arith.constant dense<0.000000e+00> : vector<2x8xf32>
    %41 = vector.multi_reduction <add>, %40, %cst_25 [2] : vector<2x8x8xf32> to vector<2x8xf32>
    %42 = vector.shape_cast %41 : vector<2x8xf32> to vector<2x8x1xf32>
    %43 = tpu.reciprocal %42 {approx = true} : vector<2x8x1xf32> -> vector<2x8x1xf32>
    %44 = vector.broadcast %43 : vector<2x8x1xf32> to vector<2x8x8xf32>
    %45 = arith.mulf %40, %44 : vector<2x8x8xf32>
    %46 = arith.truncf %45 : vector<2x8x8xf32> to vector<2x8x8xbf16>
    "tpu.trace_start"() <{level = 10 : i32, message = "bqk,bkd->bqd"}> : () -> ()
    %cst_26 = arith.constant dense<0.000000e+00> : vector<2x8x8xf32>
    %47 = tpu.matmul %46, %34, %cst_26 {dimension_numbers = #tpu.dot_dimension_numbers<[2], [1], [1], [2], [0, 0, 0, 1, 1, 2], [0], [0]>} : vector<2x8x8xbf16>, vector<2x8x8xbf16>, vector<2x8x8xf32> -> vector<2x8x8xf32>
    "tpu.trace_stop"() : () -> ()
    %48 = vector.shape_cast %47 : vector<2x8x8xf32> to vector<16x8xf32>
    %c0_27 = arith.constant 0 : index
    %c0_28 = arith.constant 0 : index
    %49 = vector.load %arg13[%c0_27, %c0_28] : memref<16x32xf32, #tpu.memory_space<vmem>>, vector<16x8xf32>
    tpu.vector_store %arg13[%c0_27, %c0_28], %48 {strides = array<i32>} : memref<16x32xf32, #tpu.memory_space<vmem>>, vector<16x8xf32>,
    %50 = vector.extract_strided_slice %26 {offsets = [0, 8], sizes = [16, 8], strides = [1, 1]} : vector<16x32xbf16> to vector<16x8xbf16>
    %51 = vector.shape_cast %50 : vector<16x8xbf16> to vector<2x8x8xbf16>
    %52 = vector.extract_strided_slice %27 {offsets = [0, 8], sizes = [16, 8], strides = [1, 1]} : vector<16x32xbf16> to vector<16x8xbf16>
    %53 = vector.shape_cast %52 : vector<16x8xbf16> to vector<2x8x8xbf16>
    %54 = vector.extract_strided_slice %28 {offsets = [0, 8], sizes = [16, 8], strides = [1, 1]} : vector<16x32xbf16> to vector<16x8xbf16>
    %55 = vector.shape_cast %54 : vector<16x8xbf16> to vector<2x8x8xbf16>
    "tpu.trace_start"() <{level = 10 : i32, message = "bqd,bkd->bqk"}> : () -> ()
    %cst_29 = arith.constant dense<0.000000e+00> : vector<2x8x8xf32>
    %56 = tpu.matmul %51, %53, %cst_29 {dimension_numbers = #tpu.dot_dimension_numbers<[2], [2], [1], [1], [0, 0, 0, 1, 1, 1], [0], [0]>} : vector<2x8x8xbf16>, vector<2x8x8xbf16>, vector<2x8x8xf32> -> vector<2x8x8xf32>
    "tpu.trace_stop"() : () -> ()
    %cst_30 = arith.constant dense<0xFF800000> : vector<2x8xf32>
    %57 = vector.multi_reduction <maximumf>, %56, %cst_30 [2] : vector<2x8x8xf32> to vector<2x8xf32>
    %58 = vector.shape_cast %57 : vector<2x8xf32> to vector<2x8x1xf32>
    %59 = vector.broadcast %58 : vector<2x8x1xf32> to vector<2x8x8xf32>
    %60 = arith.subf %56, %59 : vector<2x8x8xf32>
    %61 = math.exp %60 : vector<2x8x8xf32>
    %cst_31 = arith.constant dense<0.000000e+00> : vector<2x8xf32>
    %62 = vector.multi_reduction <add>, %61, %cst_31 [2] : vector<2x8x8xf32> to vector<2x8xf32>
    %63 = vector.shape_cast %62 : vector<2x8xf32> to vector<2x8x1xf32>
    %64 = tpu.reciprocal %63 {approx = true} : vector<2x8x1xf32> -> vector<2x8x1xf32>
    %65 = vector.broadcast %64 : vector<2x8x1xf32> to vector<2x8x8xf32>
    %66 = arith.mulf %61, %65 : vector<2x8x8xf32>
    %67 = arith.truncf %66 : vector<2x8x8xf32> to vector<2x8x8xbf16>
    "tpu.trace_start"() <{level = 10 : i32, message = "bqk,bkd->bqd"}> : () -> ()
    %cst_32 = arith.constant dense<0.000000e+00> : vector<2x8x8xf32>
    %68 = tpu.matmul %67, %55, %cst_32 {dimension_numbers = #tpu.dot_dimension_numbers<[2], [1], [1], [2], [0, 0, 0, 1, 1, 2], [0], [0]>} : vector<2x8x8xbf16>, vector<2x8x8xbf16>, vector<2x8x8xf32> -> vector<2x8x8xf32>
    "tpu.trace_stop"() : () -> ()
    %69 = vector.shape_cast %68 : vector<2x8x8xf32> to vector<16x8xf32>
    %c0_33 = arith.constant 0 : index
    %c8 = arith.constant 8 : index
    %70 = vector.load %arg13[%c0_33, %c8] : memref<16x32xf32, #tpu.memory_space<vmem>>, vector<16x8xf32>
    tpu.vector_store %arg13[%c0_33, %c8], %69 {strides = array<i32>} : memref<16x32xf32, #tpu.memory_space<vmem>>, vector<16x8xf32>,
    %71 = vector.extract_strided_slice %26 {offsets = [0, 16], sizes = [16, 8], strides = [1, 1]} : vector<16x32xbf16> to vector<16x8xbf16>
    %72 = vector.shape_cast %71 : vector<16x8xbf16> to vector<2x8x8xbf16>
    %73 = vector.extract_strided_slice %27 {offsets = [0, 16], sizes = [16, 8], strides = [1, 1]} : vector<16x32xbf16> to vector<16x8xbf16>
    %74 = vector.shape_cast %73 : vector<16x8xbf16> to vector<2x8x8xbf16>
    %75 = vector.extract_strided_slice %28 {offsets = [0, 16], sizes = [16, 8], strides = [1, 1]} : vector<16x32xbf16> to vector<16x8xbf16>
    %76 = vector.shape_cast %75 : vector<16x8xbf16> to vector<2x8x8xbf16>
    "tpu.trace_start"() <{level = 10 : i32, message = "bqd,bkd->bqk"}> : () -> ()
    %cst_34 = arith.constant dense<0.000000e+00> : vector<2x8x8xf32>
    %77 = tpu.matmul %72, %74, %cst_34 {dimension_numbers = #tpu.dot_dimension_numbers<[2], [2], [1], [1], [0, 0, 0, 1, 1, 1], [0], [0]>} : vector<2x8x8xbf16>, vector<2x8x8xbf16>, vector<2x8x8xf32> -> vector<2x8x8xf32>
    "tpu.trace_stop"() : () -> ()
    %cst_35 = arith.constant dense<0xFF800000> : vector<2x8xf32>
    %78 = vector.multi_reduction <maximumf>, %77, %cst_35 [2] : vector<2x8x8xf32> to vector<2x8xf32>
    %79 = vector.shape_cast %78 : vector<2x8xf32> to vector<2x8x1xf32>
    %80 = vector.broadcast %79 : vector<2x8x1xf32> to vector<2x8x8xf32>
    %81 = arith.subf %77, %80 : vector<2x8x8xf32>
    %82 = math.exp %81 : vector<2x8x8xf32>
    %cst_36 = arith.constant dense<0.000000e+00> : vector<2x8xf32>
    %83 = vector.multi_reduction <add>, %82, %cst_36 [2] : vector<2x8x8xf32> to vector<2x8xf32>
    %84 = vector.shape_cast %83 : vector<2x8xf32> to vector<2x8x1xf32>
    %85 = tpu.reciprocal %84 {approx = true} : vector<2x8x1xf32> -> vector<2x8x1xf32>
    %86 = vector.broadcast %85 : vector<2x8x1xf32> to vector<2x8x8xf32>
    %87 = arith.mulf %82, %86 : vector<2x8x8xf32>
    %88 = arith.truncf %87 : vector<2x8x8xf32> to vector<2x8x8xbf16>
    "tpu.trace_start"() <{level = 10 : i32, message = "bqk,bkd->bqd"}> : () -> ()
    %cst_37 = arith.constant dense<0.000000e+00> : vector<2x8x8xf32>
    %89 = tpu.matmul %88, %76, %cst_37 {dimension_numbers = #tpu.dot_dimension_numbers<[2], [1], [1], [2], [0, 0, 0, 1, 1, 2], [0], [0]>} : vector<2x8x8xbf16>, vector<2x8x8xbf16>, vector<2x8x8xf32> -> vector<2x8x8xf32>
    "tpu.trace_stop"() : () -> ()
    %90 = vector.shape_cast %89 : vector<2x8x8xf32> to vector<16x8xf32>
    %c0_38 = arith.constant 0 : index
    %c16 = arith.constant 16 : index
    %91 = vector.load %arg13[%c0_38, %c16] : memref<16x32xf32, #tpu.memory_space<vmem>>, vector<16x8xf32>
    tpu.vector_store %arg13[%c0_38, %c16], %90 {strides = array<i32>} : memref<16x32xf32, #tpu.memory_space<vmem>>, vector<16x8xf32>,
    %92 = vector.extract_strided_slice %26 {offsets = [0, 24], sizes = [16, 8], strides = [1, 1]} : vector<16x32xbf16> to vector<16x8xbf16>
    %93 = vector.shape_cast %92 : vector<16x8xbf16> to vector<2x8x8xbf16>
    %94 = vector.extract_strided_slice %27 {offsets = [0, 24], sizes = [16, 8], strides = [1, 1]} : vector<16x32xbf16> to vector<16x8xbf16>
    %95 = vector.shape_cast %94 : vector<16x8xbf16> to vector<2x8x8xbf16>
    %96 = vector.extract_strided_slice %28 {offsets = [0, 24], sizes = [16, 8], strides = [1, 1]} : vector<16x32xbf16> to vector<16x8xbf16>
    %97 = vector.shape_cast %96 : vector<16x8xbf16> to vector<2x8x8xbf16>
    "tpu.trace_start"() <{level = 10 : i32, message = "bqd,bkd->bqk"}> : () -> ()
    %cst_39 = arith.constant dense<0.000000e+00> : vector<2x8x8xf32>
    %98 = tpu.matmul %93, %95, %cst_39 {dimension_numbers = #tpu.dot_dimension_numbers<[2], [2], [1], [1], [0, 0, 0, 1, 1, 1], [0], [0]>} : vector<2x8x8xbf16>, vector<2x8x8xbf16>, vector<2x8x8xf32> -> vector<2x8x8xf32>
    "tpu.trace_stop"() : () -> ()
    %cst_40 = arith.constant dense<0xFF800000> : vector<2x8xf32>
    %99 = vector.multi_reduction <maximumf>, %98, %cst_40 [2] : vector<2x8x8xf32> to vector<2x8xf32>
    %100 = vector.shape_cast %99 : vector<2x8xf32> to vector<2x8x1xf32>
    %101 = vector.broadcast %100 : vector<2x8x1xf32> to vector<2x8x8xf32>
    %102 = arith.subf %98, %101 : vector<2x8x8xf32>
    %103 = math.exp %102 : vector<2x8x8xf32>
    %cst_41 = arith.constant dense<0.000000e+00> : vector<2x8xf32>
    %104 = vector.multi_reduction <add>, %103, %cst_41 [2] : vector<2x8x8xf32> to vector<2x8xf32>
    %105 = vector.shape_cast %104 : vector<2x8xf32> to vector<2x8x1xf32>
    %106 = tpu.reciprocal %105 {approx = true} : vector<2x8x1xf32> -> vector<2x8x1xf32>
    %107 = vector.broadcast %106 : vector<2x8x1xf32> to vector<2x8x8xf32>
    %108 = arith.mulf %103, %107 : vector<2x8x8xf32>
    %109 = arith.truncf %108 : vector<2x8x8xf32> to vector<2x8x8xbf16>
    "tpu.trace_start"() <{level = 10 : i32, message = "bqk,bkd->bqd"}> : () -> ()
    %cst_42 = arith.constant dense<0.000000e+00> : vector<2x8x8xf32>
    %110 = tpu.matmul %109, %97, %cst_42 {dimension_numbers = #tpu.dot_dimension_numbers<[2], [1], [1], [2], [0, 0, 0, 1, 1, 2], [0], [0]>} : vector<2x8x8xbf16>, vector<2x8x8xbf16>, vector<2x8x8xf32> -> vector<2x8x8xf32>
    "tpu.trace_stop"() : () -> ()
    %111 = vector.shape_cast %110 : vector<2x8x8xf32> to vector<16x8xf32>
    %c0_43 = arith.constant 0 : index
    %c24 = arith.constant 24 : index
    %112 = vector.load %arg13[%c0_43, %c24] : memref<16x32xf32, #tpu.memory_space<vmem>>, vector<16x8xf32>
    tpu.vector_store %arg13[%c0_43, %c24], %111 {strides = array<i32>} : memref<16x32xf32, #tpu.memory_space<vmem>>, vector<16x8xf32>,
    %c0_44 = arith.constant 0 : index
    %c0_45 = arith.constant 0 : index
    %113 = vector.load %arg13[%c0_44, %c0_45] : memref<16x32xf32, #tpu.memory_space<vmem>>, vector<16x32xf32>
    %114 = arith.truncf %113 : vector<16x32xf32> to vector<16x32xbf16>
    %c0_46 = arith.constant 0 : index
    %c0_47 = arith.constant 0 : index
    %115 = vector.load %arg7[%c0_46, %c0_47] : memref<32x32xbf16, #tpu.memory_space<vmem>>, vector<32x32xbf16>
    %cst_48 = arith.constant dense<0.000000e+00> : vector<16x32xf32>
    %116 = tpu.matmul %114, %115, %cst_48 {dimension_numbers = #tpu.dot_dimension_numbers<[1], [1], [0], [0], [0, 0, 1, 0], [], []>} : vector<16x32xbf16>, vector<32x32xbf16>, vector<16x32xf32> -> vector<16x32xf32>
    %c0_49 = arith.constant 0 : index
    %c0_50 = arith.constant 0 : index
    %117 = vector.load %arg11[%c0_49, %c0_50] : memref<1x32xf32, #tpu.memory_space<vmem>>, vector<1x32xf32>
    %118 = vector.broadcast %117 : vector<1x32xf32> to vector<16x32xf32>
    %119 = arith.addf %116, %118 : vector<16x32xf32>
    %120 = vector.shape_cast %119 : vector<16x32xf32> to vector<2x8x32xf32>
    %c0_51 = arith.constant 0 : index
    %c0_52 = arith.constant 0 : index
    %c0_53 = arith.constant 0 : index
    %121 = vector.load %arg12[%c0_51, %c0_52, %c0_53] : memref<2x8x32xf32, #tpu.memory_space<vmem>>, vector<2x8x32xf32>
    tpu.vector_store %arg12[%c0_51, %c0_52, %c0_53], %120 {strides = array<i32>} : memref<2x8x32xf32, #tpu.memory_space<vmem>>, vector<2x8x32xf32>,
    return
  }
  func.func @transform_0(%arg0: i32) -> (i32, i32, i32) {
    %c0_i32 = arith.constant 0 : i32
    %c0_i32_0 = arith.constant 0 : i32
    %c0_i32_1 = arith.constant 0 : i32
    return %arg0, %c0_i32, %c0_i32_0 : i32, i32, i32
  }
  func.func @transform_1(%arg0: i32) -> (i32, i32, i32) {
    %c0_i32 = arith.constant 0 : i32
    %c0_i32_0 = arith.constant 0 : i32
    %c0_i32_1 = arith.constant 0 : i32
    return %arg0, %c0_i32, %c0_i32_0 : i32, i32, i32
  }
  func.func @transform_2(%arg0: i32) -> (i32, i32, i32) {
    %c0_i32 = arith.constant 0 : i32
    %c0_i32_0 = arith.constant 0 : i32
    %c0_i32_1 = arith.constant 0 : i32
    return %arg0, %c0_i32, %c0_i32_0 : i32, i32, i32
  }
  func.func @transform_3(%arg0: i32) -> (i32, i32) {
    %c0_i32 = arith.constant 0 : i32
    %c0_i32_0 = arith.constant 0 : i32
    %c0_i32_1 = arith.constant 0 : i32
    return %c0_i32, %c0_i32_0 : i32, i32
  }
  func.func @transform_4(%arg0: i32) -> (i32, i32) {
    %c0_i32 = arith.constant 0 : i32
    %c0_i32_0 = arith.constant 0 : i32
    %c0_i32_1 = arith.constant 0 : i32
    return %c0_i32, %c0_i32_0 : i32, i32
  }
  func.func @transform_5(%arg0: i32) -> (i32, i32) {
    %c0_i32 = arith.constant 0 : i32
    %c0_i32_0 = arith.constant 0 : i32
    %c0_i32_1 = arith.constant 0 : i32
    return %c0_i32, %c0_i32_0 : i32, i32
  }
  func.func @transform_6(%arg0: i32) -> (i32, i32) {
    %c0_i32 = arith.constant 0 : i32
    %c0_i32_0 = arith.constant 0 : i32
    %c0_i32_1 = arith.constant 0 : i32
    return %c0_i32, %c0_i32_0 : i32, i32
  }
  func.func @transform_7(%arg0: i32) -> (i32, i32) {
    %c0_i32 = arith.constant 0 : i32
    %c0_i32_0 = arith.constant 0 : i32
    %c0_i32_1 = arith.constant 0 : i32
    return %c0_i32, %c0_i32_0 : i32, i32
  }
  func.func @transform_8(%arg0: i32) -> (i32, i32) {
    %c0_i32 = arith.constant 0 : i32
    %c0_i32_0 = arith.constant 0 : i32
    %c0_i32_1 = arith.constant 0 : i32
    return %c0_i32, %c0_i32_0 : i32, i32
  }
  func.func @transform_9(%arg0: i32) -> (i32, i32) {
    %c0_i32 = arith.constant 0 : i32
    %c0_i32_0 = arith.constant 0 : i32
    %c0_i32_1 = arith.constant 0 : i32
    return %c0_i32, %c0_i32_0 : i32, i32
  }
  func.func @transform_10(%arg0: i32) -> (i32, i32) {
    %c0_i32 = arith.constant 0 : i32
    %c0_i32_0 = arith.constant 0 : i32
    %c0_i32_1 = arith.constant 0 : i32
    return %c0_i32, %c0_i32_0 : i32, i32
  }
  func.func @transform_11(%arg0: i32) -> (i32, i32, i32) {
    %c0_i32 = arith.constant 0 : i32
    %c0_i32_0 = arith.constant 0 : i32
    %c0_i32_1 = arith.constant 0 : i32
    return %arg0, %c0_i32, %c0_i32_0 : i32, i32, i32
  }
}

</mosaic_0001>

<llo_original>
// kernel: tpu_custom_call.1
$region0: #{tpu_custom_call.1}
  #allocation0 [shape = 'u32[]', space=smem, size = 0x4, offset = 0x4, fixed_abs, tag = 'smem constant byte address 0x4 - core index']
  #allocation1 [shape = 'u32[144,128]{1,0:T(1,128)}', space=vmem, size = 0x12000, scoped, tag = 'internal scratch']
  #allocation2 [shape = 'f32[16,32]{1,0:T(8,128)}', space=vmem, size = 0x2000, scoped, tag = 'scratch operand']
  %s0 = inlined_call_operand.hbm [shape: f32[2,8,32], index: 0, kind: input, shape index: {}]
  %s1 = inlined_call_operand.hbm [shape: f32[2,8,32], index: 1, kind: input, shape index: {}]
  %s2 = inlined_call_operand.hbm [shape: f32[2,8,32], index: 2, kind: input, shape index: {}]
  %s3 = inlined_call_operand.hbm [shape: bf16[32,32], index: 3, kind: input, shape index: {}]
  %s4 = inlined_call_operand.hbm [shape: bf16[32,32], index: 4, kind: input, shape index: {}]
  %s5 = inlined_call_operand.vmem [shape: bf16[32,32], index: 5, kind: input, shape index: {}]
  %s6 = inlined_call_operand.hbm [shape: bf16[32,32], index: 6, kind: input, shape index: {}]
  %s7 = inlined_call_operand.vmem [shape: f32[1,32], index: 7, kind: input, shape index: {}]
  %s8 = inlined_call_operand.vmem [shape: f32[1,32], index: 8, kind: input, shape index: {}]
  %s9 = inlined_call_operand.vmem [shape: f32[1,32], index: 9, kind: input, shape index: {}]
  %s10 = inlined_call_operand.vmem [shape: f32[1,32], index: 10, kind: input, shape index: {}]
  %s11 = inlined_call_operand.hbm [shape: f32[2,8,32], index: 11, kind: output, shape index: {}]
  %s12 = sld [smem:[#allocation0]]
  $region78: #{tpu_custom_call.1} parent=0
    _
  %s14 = ssub.s32 1, %s12
  %s15 = scalar_select 0, %s14, %s12
  $region1: #{tpu_custom_call.1} parent=0
    #allocation3 [shape = 'u8[8192]{0}', space=vmem, size = 0x2000, scoped, tag = 'input window, operand 0, single buffered']
    #allocation4 [shape = 's32[1]{0}', space=sflag, size = 0x4, scoped, tag = 'scoped memory for tpu_custom_call.1']
    #allocation5 [shape = 's32[1]{0}', space=sflag, size = 0x4, scoped, tag = 'scoped memory for tpu_custom_call.1']
    #allocation6 [shape = 'u8[8192]{0}', space=vmem, size = 0x2000, scoped, tag = 'input window, operand 1, single buffered']
    #allocation7 [shape = 's32[1]{0}', space=sflag, size = 0x4, scoped, tag = 'scoped memory for tpu_custom_call.1']
    #allocation8 [shape = 'u8[8192]{0}', space=vmem, size = 0x2000, scoped, tag = 'input window, operand 2, single buffered']
    #allocation9 [shape = 'u8[8192]{0}', space=vmem, size = 0x2000, scoped, tag = 'input window, operand 3, single buffered']
    #allocation10 [shape = 's32[1]{0}', space=sflag, size = 0x4, scoped, tag = 'scoped memory for tpu_custom_call.1']
    #allocation11 [shape = 'u8[8192]{0}', space=vmem, size = 0x2000, scoped, tag = 'input window, operand 4, single buffered']
    #allocation12 [shape = 'u8[8192]{0}', space=vmem, size = 0x2000, scoped, tag = 'input window, operand 6, single buffered']
    #allocation13 [shape = 's32[1]{0}', space=sflag, size = 0x4, scoped, tag = 'scoped memory for tpu_custom_call.1']
    #allocation14 [shape = 'u8[8192]{0}', space=vmem, size = 0x2000, scoped, tag = 'output window, operand 0, single buffered']
    %16 = vsyncpa [#allocation4], 0
    %17 = vsyncpa [#allocation7], 0
    %18 = vsyncpa [#allocation10], 0
    %19 = vsyncpa [#allocation13], 0
    %20 = vsyncpa [#allocation5], 0
    // Predicated region
    $region2: #{tpu_custom_call.1} parent=1 // pred_check
      _
    $region3: #{tpu_custom_call.1} parent=1 // pred_check_branch
      %22 = sbr.rel (0) target = $region5
    $region4: #{tpu_custom_call.1} parent=1 // pred_region
      %s24 = ssub.s32 256, 256
      %25 = vsyncadd [#allocation4], %s24
      %s26 = sshll.u32 [#allocation3], 4
      %s27 = int_to_ptr.vmem [resolvable:$true] %s26
      %32 = dma.hbm_to_vmem [thread:$0]  %s0, 256, %s27, [#allocation4], 128, 128, 8
    $region5: #{tpu_custom_call.1} parent=1 // pred_fallthru
      _
    // Predicated region
    $region6: #{tpu_custom_call.1} parent=1 // pred_check
      _
    $region7: #{tpu_custom_call.1} parent=1 // pred_check_branch
      %34 = sbr.rel (0) target = $region9
    $region8: #{tpu_custom_call.1} parent=1 // pred_region
      %s36 = ssub.s32 256, 256
      %37 = vsyncadd [#allocation7], %s36
      %s38 = sshll.u32 [#allocation6], 4
      %s39 = int_to_ptr.vmem [resolvable:$true] %s38
      %44 = dma.hbm_to_vmem [thread:$0]  %s1, 256, %s39, [#allocation7], 128, 128, 8
    $region9: #{tpu_custom_call.1} parent=1 // pred_fallthru
      _
    // Predicated region
    $region10: #{tpu_custom_call.1} parent=1 // pred_check
      _
    $region11: #{tpu_custom_call.1} parent=1 // pred_check_branch
      %46 = sbr.rel (0) target = $region13
    $region12: #{tpu_custom_call.1} parent=1 // pred_region
      %s48 = ssub.s32 256, 256
      %49 = vsyncadd [#allocation7], %s48
      %s50 = sshll.u32 [#allocation8], 4
      %s51 = int_to_ptr.vmem [resolvable:$true] %s50
      %56 = dma.hbm_to_vmem [thread:$0]  %s2, 256, %s51, [#allocation7], 128, 128, 8
    $region13: #{tpu_custom_call.1} parent=1 // pred_fallthru
      _
    // Predicated region
    $region14: #{tpu_custom_call.1} parent=1 // pred_check
      _
    $region15: #{tpu_custom_call.1} parent=1 // pred_check_branch
      %58 = sbr.rel (0) target = $region17
    $region16: #{tpu_custom_call.1} parent=1 // pred_region
      %s60 = ssub.s32 256, 256
      %61 = vsyncadd [#allocation10], %s60
      %s62 = sshll.u32 [#allocation9], 4
      %s63 = int_to_ptr.vmem [resolvable:$true] %s62
      %68 = dma.hbm_to_vmem [thread:$0]  %s3, 256, %s63, [#allocation10], 64, 64, 4
    $region17: #{tpu_custom_call.1} parent=1 // pred_fallthru
      _
    // Predicated region
    $region18: #{tpu_custom_call.1} parent=1 // pred_check
      _
    $region19: #{tpu_custom_call.1} parent=1 // pred_check_branch
      %70 = sbr.rel (0) target = $region21
    $region20: #{tpu_custom_call.1} parent=1 // pred_region
      %s72 = ssub.s32 256, 256
      %73 = vsyncadd [#allocation10], %s72
      %s74 = sshll.u32 [#allocation11], 4
      %s75 = int_to_ptr.vmem [resolvable:$true] %s74
      %80 = dma.hbm_to_vmem [thread:$0]  %s4, 256, %s75, [#allocation10], 64, 64, 4
    $region21: #{tpu_custom_call.1} parent=1 // pred_fallthru
      _
    // Predicated region
    $region22: #{tpu_custom_call.1} parent=1 // pred_check
      _
    $region23: #{tpu_custom_call.1} parent=1 // pred_check_branch
      %82 = sbr.rel (0) target = $region25
    $region24: #{tpu_custom_call.1} parent=1 // pred_region
      _
    $region25: #{tpu_custom_call.1} parent=1 // pred_fallthru
      _
    // Predicated region
    $region26: #{tpu_custom_call.1} parent=1 // pred_check
      _
    $region27: #{tpu_custom_call.1} parent=1 // pred_check_branch
      %84 = sbr.rel (0) target = $region29
    $region28: #{tpu_custom_call.1} parent=1 // pred_region
      %s86 = ssub.s32 256, 256
      %87 = vsyncadd [#allocation13], %s86
      %s88 = sshll.u32 [#allocation12], 4
      %s89 = int_to_ptr.vmem [resolvable:$true] %s88
      %94 = dma.hbm_to_vmem [thread:$0]  %s6, 256, %s89, [#allocation13], 64, 64, 4
    $region29: #{tpu_custom_call.1} parent=1 // pred_fallthru
      _
    // Predicated region
    $region30: #{tpu_custom_call.1} parent=1 // pred_check
      _
    $region31: #{tpu_custom_call.1} parent=1 // pred_check_branch
      %96 = sbr.rel (0) target = $region33
    $region32: #{tpu_custom_call.1} parent=1 // pred_region
      _
    $region33: #{tpu_custom_call.1} parent=1 // pred_fallthru
      _
    // Predicated region
    $region34: #{tpu_custom_call.1} parent=1 // pred_check
      _
    $region35: #{tpu_custom_call.1} parent=1 // pred_check_branch
      %98 = sbr.rel (0) target = $region37
    $region36: #{tpu_custom_call.1} parent=1 // pred_region
      _
    $region37: #{tpu_custom_call.1} parent=1 // pred_fallthru
      _
    // Predicated region
    $region38: #{tpu_custom_call.1} parent=1 // pred_check
      _
    $region39: #{tpu_custom_call.1} parent=1 // pred_check_branch
      %100 = sbr.rel (0) target = $region41
    $region40: #{tpu_custom_call.1} parent=1 // pred_region
      _
    $region41: #{tpu_custom_call.1} parent=1 // pred_fallthru
      _
    // Predicated region
    $region42: #{tpu_custom_call.1} parent=1 // pred_check
      _
    $region43: #{tpu_custom_call.1} parent=1 // pred_check_branch
      %102 = sbr.rel (0) target = $region45
    $region44: #{tpu_custom_call.1} parent=1 // pred_region
      _
    $region45: #{tpu_custom_call.1} parent=1 // pred_fallthru
      _
    // Predicated region
    $region46: #{tpu_custom_call.1} parent=1 // pred_check
      _
    $region47: #{tpu_custom_call.1} parent=1 // pred_check_branch
      %104 = sbr.rel (0) target = $region49
    $region48: #{tpu_custom_call.1} parent=1 // pred_region
      %105 = dma.done [#allocation4], 256
    $region49: #{tpu_custom_call.1} parent=1 // pred_fallthru
      _
    // Predicated region
    $region50: #{tpu_custom_call.1} parent=1 // pred_check
      _
    $region51: #{tpu_custom_call.1} parent=1 // pred_check_branch
      %107 = sbr.rel (0) target = $region53
    $region52: #{tpu_custom_call.1} parent=1 // pred_region
      %108 = dma.done [#allocation7], 256
    $region53: #{tpu_custom_call.1} parent=1 // pred_fallthru
      _
    // Predicated region
    $region54: #{tpu_custom_call.1} parent=1 // pred_check
      _
    $region55: #{tpu_custom_call.1} parent=1 // pred_check_branch
      %110 = sbr.rel (0) target = $region57
    $region56: #{tpu_custom_call.1} parent=1 // pred_region
      %111 = dma.done [#allocation7], 256
    $region57: #{tpu_custom_call.1} parent=1 // pred_fallthru
      _
    // Predicated region
    $region58: #{tpu_custom_call.1} parent=1 // pred_check
      _
    $region59: #{tpu_custom_call.1} parent=1 // pred_check_branch
      %113 = sbr.rel (0) target = $region61
    $region60: #{tpu_custom_call.1} parent=1 // pred_region
      %114 = dma.done [#allocation10], 256
    $region61: #{tpu_custom_call.1} parent=1 // pred_fallthru
      _
    // Predicated region
    $region62: #{tpu_custom_call.1} parent=1 // pred_check
      _
    $region63: #{tpu_custom_call.1} parent=1 // pred_check_branch
      %116 = sbr.rel (0) target = $region65
    $region64: #{tpu_custom_call.1} parent=1 // pred_region
      %117 = dma.done [#allocation10], 256
    $region65: #{tpu_custom_call.1} parent=1 // pred_fallthru
      _
    // Predicated region
    $region66: #{tpu_custom_call.1} parent=1 // pred_check
      _
    $region67: #{tpu_custom_call.1} parent=1 // pred_check_branch
      %119 = sbr.rel (0) target = $region69
    $region68: #{tpu_custom_call.1} parent=1 // pred_region
      %120 = dma.done [#allocation13], 256
    $region69: #{tpu_custom_call.1} parent=1 // pred_fallthru
      _
    %v122 = vld [vmem:[#allocation3] sm:$0xff]
    %v123 = vld [vmem:[#allocation3 + $0x8] sm:$0xff]
    %v124 = vpack.c.bf16 %v123, %v122
    %v125 = vld [vmem:[#allocation6] sm:$0xff]
    %v126 = vld [vmem:[#allocation6 + $0x8] sm:$0xff]
    %v127 = vpack.c.bf16 %v126, %v125
    %v128 = vld [vmem:[#allocation8] sm:$0xff]
    %v129 = vld [vmem:[#allocation8 + $0x8] sm:$0xff]
    %v130 = vpack.c.bf16 %v129, %v128
    %v131 = vld [vmem:[#allocation9] sm:$0xf]
    %v132 = vld [vmem:[#allocation9 + $0x4] sm:$0xf]
    %v133 = vld [vmem:[#allocation9 + $0x8] sm:$0xf]
    %v134 = vld [vmem:[#allocation9 + $0xc] sm:$0xf]
    %v135 = vld [vmem:[%s7] sm:$0x1]
    %v137 = vlaneseq
    %v138 = vshrl.u32 %v137, 7
    %v139 = vsub.s32 0, %v138
    %v140 = vrot.slane %v135, %v139
    %v146 = vunpack.c.l.b16 %v131
    %v147 = vunpack.c.l.b16 %v132
    %v148 = vunpack.c.l.b16 %v133
    %v149 = vunpack.c.l.b16 %v134
    %v150 = vpack.c.b16 %v147, %v146
    %v151 = vpack.c.b16 %v149, %v148
    %vm152 = vcmask 261120
    %v154 = vsel %vm152, %v124, 0
    %v157 = vsel %vm152, %v150, 0
    %v160 = vsel %vm152, %v151, 0
    %162 = vmatprep.subr.bf16.mxu0 0
    %163 = vmatpush1.bf16.xpose.msra.mxu0 %v157
    %164 = vmatprep.subr.bf16.mxu0 0
    %165 = vmatpush1.bf16.xpose.msra.mxu0 %v160
    %166 = vmatprep.subr.bf16.mxu0 0
    %167 = vmatpush1.bf16.xpose.msra.mxu0 0
    %168 = vmatprep.subr.bf16.mxu0 0
    %169 = vmatpush1.bf16.xpose.msra.mxu0 0
    %170 = vmatprep.subr.bf16.mxu0 0
    %171 = vmatpush1.bf16.xpose.msra.mxu0 0
    %172 = vmatprep.subr.bf16.mxu0 0
    %173 = vmatpush1.bf16.xpose.msra.mxu0 0
    %174 = vmatprep.subr.bf16.mxu0 0
    %175 = vmatpush1.bf16.xpose.msra.mxu0 0
    %176 = vmatprep.subr.bf16.mxu0 0
    %177 = vmatpush1.bf16.xpose.msra.mxu0 0
    %178 = vmatprep.subr.bf16.mxu0 0
    %179 = vmatpush1.bf16.xpose.msra.mxu0 0
    %180 = vmatprep.subr.bf16.mxu0 0
    %181 = vmatpush1.bf16.xpose.msra.mxu0 0
    %182 = vmatprep.subr.bf16.mxu0 0
    %183 = vmatpush1.bf16.xpose.msra.mxu0 0
    %184 = vmatprep.subr.bf16.mxu0 0
    %185 = vmatpush1.bf16.xpose.msra.mxu0 0
    %186 = vmatprep.subr.bf16.mxu0 0
    %187 = vmatpush1.bf16.xpose.msra.mxu0 0
    %188 = vmatprep.subr.bf16.mxu0 0
    %189 = vmatpush1.bf16.xpose.msra.mxu0 0
    %190 = vmatprep.subr.bf16.mxu0 0
    %191 = vmatpush1.bf16.xpose.msra.mxu0 0
    %192 = vmatprep.subr.bf16.mxu0 0
    %193 = vmatpush1.bf16.xpose.msra.mxu0 0
    %194 = vmatprep.mubr.bf16.mxu0 0
    %195 = vmatmul.mubr.bf16.gmra.mrb[0].mxu0 %v154
    %v196 = vpop.f32.mrb[0].mxu0
    %v197 = vadd.f32 %v140, %v196
    %v198 = vpop.f32.mrb[0].mxu0
    %v199 = vpop.f32.mrb[0].mxu0
    %v200 = vadd.f32 %v140, %v199
    %v201 = vpop.f32.mrb[0].mxu0
    %202 = vdwg.mxu0
    %v203 = vmul.f32 %v197, 0.35355338
    %v204 = vmul.f32 %v200, 0.35355338
    %v205 = vld [vmem:[#allocation11] sm:$0xf]
    %v206 = vld [vmem:[#allocation11 + $0x4] sm:$0xf]
    %v207 = vld [vmem:[#allocation11 + $0x8] sm:$0xf]
    %v208 = vld [vmem:[#allocation11 + $0xc] sm:$0xf]
    %v209 = vld [vmem:[%s8] sm:$0x1]
    %v211 = vlaneseq
    %v212 = vshrl.u32 %v211, 7
    %v213 = vsub.s32 0, %v212
    %v214 = vrot.slane %v209, %v213
    %v220 = vunpack.c.l.b16 %v205
    %v221 = vunpack.c.l.b16 %v206
    %v222 = vunpack.c.l.b16 %v207
    %v223 = vunpack.c.l.b16 %v208
    %v224 = vpack.c.b16 %v221, %v220
    %v225 = vpack.c.b16 %v223, %v222
    %v227 = vsel %vm152, %v127, 0
    %v230 = vsel %vm152, %v224, 0
    %v233 = vsel %vm152, %v225, 0
    %235 = vmatprep.subr.bf16.mxu0 0
    %236 = vmatpush1.bf16.xpose.msra.mxu0 %v230
    %237 = vmatprep.subr.bf16.mxu0 0
    %238 = vmatpush1.bf16.xpose.msra.mxu0 %v233
    %239 = vmatprep.subr.bf16.mxu0 0
    %240 = vmatpush1.bf16.xpose.msra.mxu0 0
    %241 = vmatprep.subr.bf16.mxu0 0
    %242 = vmatpush1.bf16.xpose.msra.mxu0 0
    %243 = vmatprep.subr.bf16.mxu0 0
    %244 = vmatpush1.bf16.xpose.msra.mxu0 0
    %245 = vmatprep.subr.bf16.mxu0 0
    %246 = vmatpush1.bf16.xpose.msra.mxu0 0
    %247 = vmatprep.subr.bf16.mxu0 0
    %248 = vmatpush1.bf16.xpose.msra.mxu0 0
    %249 = vmatprep.subr.bf16.mxu0 0
    %250 = vmatpush1.bf16.xpose.msra.mxu0 0
    %251 = vmatprep.subr.bf16.mxu0 0
    %252 = vmatpush1.bf16.xpose.msra.mxu0 0
    %253 = vmatprep.subr.bf16.mxu0 0
    %254 = vmatpush1.bf16.xpose.msra.mxu0 0
    %255 = vmatprep.subr.bf16.mxu0 0
    %256 = vmatpush1.bf16.xpose.msra.mxu0 0
    %257 = vmatprep.subr.bf16.mxu0 0
    %258 = vmatpush1.bf16.xpose.msra.mxu0 0
    %259 = vmatprep.subr.bf16.mxu0 0
    %260 = vmatpush1.bf16.xpose.msra.mxu0 0
    %261 = vmatprep.subr.bf16.mxu0 0
    %262 = vmatpush1.bf16.xpose.msra.mxu0 0
    %263 = vmatprep.subr.bf16.mxu0 0
    %264 = vmatpush1.bf16.xpose.msra.mxu0 0
    %265 = vmatprep.subr.bf16.mxu0 0
    %266 = vmatpush1.bf16.xpose.msra.mxu0 0
    %267 = vmatprep.mubr.bf16.mxu0 0
    %268 = vmatmul.mubr.bf16.gmra.mrb[0].mxu0 %v227
    %v269 = vpop.f32.mrb[0].mxu0
    %v270 = vadd.f32 %v214, %v269
    %v271 = vpop.f32.mrb[0].mxu0
    %v272 = vpop.f32.mrb[0].mxu0
    %v273 = vadd.f32 %v214, %v272
    %v274 = vpop.f32.mrb[0].mxu0
    %275 = vdwg.mxu0
    %v276 = vld [vmem:[%s5] sm:$0xf]
    %v277 = vld [vmem:[%s5 + $0x4] sm:$0xf]
    %v278 = vld [vmem:[%s5 + $0x8] sm:$0xf]
    %v279 = vld [vmem:[%s5 + $0xc] sm:$0xf]
    %v280 = vld [vmem:[%s9] sm:$0x1]
    %v282 = vlaneseq
    %v283 = vshrl.u32 %v282, 7
    %v284 = vsub.s32 0, %v283
    %v285 = vrot.slane %v280, %v284
    %v291 = vunpack.c.l.b16 %v276
    %v292 = vunpack.c.l.b16 %v277
    %v293 = vunpack.c.l.b16 %v278
    %v294 = vunpack.c.l.b16 %v279
    %v295 = vpack.c.b16 %v292, %v291
    %v296 = vpack.c.b16 %v294, %v293
    %v298 = vsel %vm152, %v130, 0
    %v301 = vsel %vm152, %v295, 0
    %v304 = vsel %vm152, %v296, 0
    %306 = vmatprep.subr.bf16.mxu0 0
    %307 = vmatpush1.bf16.xpose.msra.mxu0 %v301
    %308 = vmatprep.subr.bf16.mxu0 0
    %309 = vmatpush1.bf16.xpose.msra.mxu0 %v304
    %310 = vmatprep.subr.bf16.mxu0 0
    %311 = vmatpush1.bf16.xpose.msra.mxu0 0
    %312 = vmatprep.subr.bf16.mxu0 0
    %313 = vmatpush1.bf16.xpose.msra.mxu0 0
    %314 = vmatprep.subr.bf16.mxu0 0
    %315 = vmatpush1.bf16.xpose.msra.mxu0 0
    %316 = vmatprep.subr.bf16.mxu0 0
    %317 = vmatpush1.bf16.xpose.msra.mxu0 0
    %318 = vmatprep.subr.bf16.mxu0 0
    %319 = vmatpush1.bf16.xpose.msra.mxu0 0
    %320 = vmatprep.subr.bf16.mxu0 0
    %321 = vmatpush1.bf16.xpose.msra.mxu0 0
    %322 = vmatprep.subr.bf16.mxu0 0
    %323 = vmatpush1.bf16.xpose.msra.mxu0 0
    %324 = vmatprep.subr.bf16.mxu0 0
    %325 = vmatpush1.bf16.xpose.msra.mxu0 0
    %326 = vmatprep.subr.bf16.mxu0 0
    %327 = vmatpush1.bf16.xpose.msra.mxu0 0
    %328 = vmatprep.subr.bf16.mxu0 0
    %329 = vmatpush1.bf16.xpose.msra.mxu0 0
    %330 = vmatprep.subr.bf16.mxu0 0
    %331 = vmatpush1.bf16.xpose.msra.mxu0 0
    %332 = vmatprep.subr.bf16.mxu0 0
    %333 = vmatpush1.bf16.xpose.msra.mxu0 0
    %334 = vmatprep.subr.bf16.mxu0 0
    %335 = vmatpush1.bf16.xpose.msra.mxu0 0
    %336 = vmatprep.subr.bf16.mxu0 0
    %337 = vmatpush1.bf16.xpose.msra.mxu0 0
    %338 = vmatprep.mubr.bf16.mxu0 0
    %339 = vmatmul.mubr.bf16.gmra.mrb[0].mxu0 %v298
    %v340 = vpop.f32.mrb[0].mxu0
    %v341 = vadd.f32 %v285, %v340
    %v342 = vpop.f32.mrb[0].mxu0
    %v343 = vpop.f32.mrb[0].mxu0
    %v344 = vadd.f32 %v285, %v343
    %v345 = vpop.f32.mrb[0].mxu0
    %346 = vdwg.mxu0
    %v347 = vpack.c.bf16 %v204, %v203
    %v348 = vpack.c.bf16 %v273, %v270
    %v349 = vpack.c.bf16 %v344, %v341
    %v351 = vunpack.c.l.b16 %v347
    %v352 = vunpack.c.h.b16 %v347
    %v353 = vpack.c.b16 %v351, %v351
    %v354 = vpack.c.b16 %v352, %v352
    %v356 = vunpack.c.l.b16 %v348
    %v357 = vunpack.c.h.b16 %v348
    %v358 = vpack.c.b16 %v356, %v356
    %v359 = vpack.c.b16 %v357, %v357
    %v361 = vunpack.c.l.b16 %v349
    %v362 = vunpack.c.h.b16 %v349
    %v363 = vpack.c.b16 %v361, %v361
    %v364 = vpack.c.b16 %v362, %v362
    %vm365 = vcmask 64512
    %v367 = vsel %vm365, %v353, 0
    %v370 = vsel %vm365, %v358, 0
    %372 = vmatprep.subr.bf16.mxu0 0
    %373 = vmatpush1.bf16.xpose.msra.mxu0 %v370
    %374 = vmatprep.subr.bf16.mxu0 0
    %375 = vmatpush1.bf16.xpose.msra.mxu0 0
    %376 = vmatprep.subr.bf16.mxu0 0
    %377 = vmatpush1.bf16.xpose.msra.mxu0 0
    %378 = vmatprep.subr.bf16.mxu0 0
    %379 = vmatpush1.bf16.xpose.msra.mxu0 0
    %380 = vmatprep.subr.bf16.mxu0 0
    %381 = vmatpush1.bf16.xpose.msra.mxu0 0
    %382 = vmatprep.subr.bf16.mxu0 0
    %383 = vmatpush1.bf16.xpose.msra.mxu0 0
    %384 = vmatprep.subr.bf16.mxu0 0
    %385 = vmatpush1.bf16.xpose.msra.mxu0 0
    %386 = vmatprep.subr.bf16.mxu0 0
    %387 = vmatpush1.bf16.xpose.msra.mxu0 0
    %388 = vmatprep.subr.bf16.mxu0 0
    %389 = vmatpush1.bf16.xpose.msra.mxu0 0
    %390 = vmatprep.subr.bf16.mxu0 0
    %391 = vmatpush1.bf16.xpose.msra.mxu0 0
    %392 = vmatprep.subr.bf16.mxu0 0
    %393 = vmatpush1.bf16.xpose.msra.mxu0 0
    %394 = vmatprep.subr.bf16.mxu0 0
    %395 = vmatpush1.bf16.xpose.msra.mxu0 0
    %396 = vmatprep.subr.bf16.mxu0 0
    %397 = vmatpush1.bf16.xpose.msra.mxu0 0
    %398 = vmatprep.subr.bf16.mxu0 0
    %399 = vmatpush1.bf16.xpose.msra.mxu0 0
    %400 = vmatprep.subr.bf16.mxu0 0
    %401 = vmatpush1.bf16.xpose.msra.mxu0 0
    %402 = vmatprep.subr.bf16.mxu0 0
    %403 = vmatpush1.bf16.xpose.msra.mxu0 0
    %404 = vmatprep.mubr.bf16.mxu0 0
    %405 = vmatmul.mubr.bf16.gmra.mrb[0].mxu0 %v367
    %v406 = vpop.f32.mrb[0].mxu0
    %v407 = vadd.f32 0.0, %v406
    %v408 = vpop.f32.mrb[0].mxu0
    %v409 = vpop.f32.mrb[0].mxu0
    %v410 = vpop.f32.mrb[0].mxu0
    %411 = vdwg.mxu0
    %v413 = vsel %vm365, %v354, 0
    %v416 = vsel %vm365, %v359, 0
    %418 = vmatprep.subr.bf16.mxu0 0
    %419 = vmatpush1.bf16.xpose.msra.mxu0 %v416
    %420 = vmatprep.subr.bf16.mxu0 0
    %421 = vmatpush1.bf16.xpose.msra.mxu0 0
    %422 = vmatprep.subr.bf16.mxu0 0
    %423 = vmatpush1.bf16.xpose.msra.mxu0 0
    %424 = vmatprep.subr.bf16.mxu0 0
    %425 = vmatpush1.bf16.xpose.msra.mxu0 0
    %426 = vmatprep.subr.bf16.mxu0 0
    %427 = vmatpush1.bf16.xpose.msra.mxu0 0
    %428 = vmatprep.subr.bf16.mxu0 0
    %429 = vmatpush1.bf16.xpose.msra.mxu0 0
    %430 = vmatprep.subr.bf16.mxu0 0
    %431 = vmatpush1.bf16.xpose.msra.mxu0 0
    %432 = vmatprep.subr.bf16.mxu0 0
    %433 = vmatpush1.bf16.xpose.msra.mxu0 0
    %434 = vmatprep.subr.bf16.mxu0 0
    %435 = vmatpush1.bf16.xpose.msra.mxu0 0
    %436 = vmatprep.subr.bf16.mxu0 0
    %437 = vmatpush1.bf16.xpose.msra.mxu0 0
    %438 = vmatprep.subr.bf16.mxu0 0
    %439 = vmatpush1.bf16.xpose.msra.mxu0 0
    %440 = vmatprep.subr.bf16.mxu0 0
    %441 = vmatpush1.bf16.xpose.msra.mxu0 0
    %442 = vmatprep.subr.bf16.mxu0 0
    %443 = vmatpush1.bf16.xpose.msra.mxu0 0
    %444 = vmatprep.subr.bf16.mxu0 0
    %445 = vmatpush1.bf16.xpose.msra.mxu0 0
    %446 = vmatprep.subr.bf16.mxu0 0
    %447 = vmatpush1.bf16.xpose.msra.mxu0 0
    %448 = vmatprep.subr.bf16.mxu0 0
    %449 = vmatpush1.bf16.xpose.msra.mxu0 0
    %450 = vmatprep.mubr.bf16.mxu0 0
    %451 = vmatmul.mubr.bf16.gmra.mrb[0].mxu0 %v413
    %v452 = vpop.f32.mrb[0].mxu0
    %v453 = vadd.f32 0.0, %v452
    %v454 = vpop.f32.mrb[0].mxu0
    %v455 = vpop.f32.mrb[0].mxu0
    %v456 = vpop.f32.mrb[0].mxu0
    %457 = vdwg.mxu0
    %v458 = vsel %vm365, %v407, -inf
    %459 = vmax.xlane.f32.xlu0 %v458
    %v460 = vpop.xlane.xlu0 %459
    %v461 = vsel %vm365, %v453, -inf
    %462 = vmax.xlane.f32.xlu0 %v461
    %v463 = vpop.xlane.xlu0 %462
    %v464 = vsub.f32 %v407, %v460
    %v465 = vsub.f32 %v453, %v463
    %v466 = vmul.f32 %v464, 1.442695
    %v467 = vpow.pop %v466
    %v468 = vmul.f32 %v465, 1.442695
    %v469 = vpow.pop %v468
    %v470 = vsel %vm365, %v467, 0.0
    %471 = vadd.xlane.f32.xlu0 %v470
    %v472 = vpop.xlane.xlu0 %471
    %v473 = vsel %vm365, %v469, 0.0
    %474 = vadd.xlane.f32.xlu0 %v473
    %v475 = vpop.xlane.xlu0 %474
    %v476 = vrcp.pop %v472
    %v477 = vrcp.pop %v475
    %v478 = vmul.f32 %v467, %v476
    %v479 = vmul.f32 %v469, %v477
    %v480 = vpack.c.bf16 %v478, %v478
    %v481 = vpack.c.bf16 %v479, %v479
    %v483 = vsel %vm365, %v480, 0
    %vm485 = vcmask 1043456
    %v487 = vsel %vm485, %v363, 0
    %489 = vmatprep.subr.bf16.mxu0 0
    %490 = vmatpush1.bf16.msra.mxu0 %v487
    %491 = vmatprep.subr.bf16.mxu0 0
    %492 = vmatpush1.bf16.msra.mxu0 0
    %493 = vmatprep.subr.bf16.mxu0 0
    %494 = vmatpush1.bf16.msra.mxu0 0
    %495 = vmatprep.subr.bf16.mxu0 0
    %496 = vmatpush1.bf16.msra.mxu0 0
    %497 = vmatprep.subr.bf16.mxu0 0
    %498 = vmatpush1.bf16.msra.mxu0 0
    %499 = vmatprep.subr.bf16.mxu0 0
    %500 = vmatpush1.bf16.msra.mxu0 0
    %501 = vmatprep.subr.bf16.mxu0 0
    %502 = vmatpush1.bf16.msra.mxu0 0
    %503 = vmatprep.subr.bf16.mxu0 0
    %504 = vmatpush1.bf16.msra.mxu0 0
    %505 = vmatprep.subr.bf16.mxu0 0
    %506 = vmatpush1.bf16.msra.mxu0 0
    %507 = vmatprep.subr.bf16.mxu0 0
    %508 = vmatpush1.bf16.msra.mxu0 0
    %509 = vmatprep.subr.bf16.mxu0 0
    %510 = vmatpush1.bf16.msra.mxu0 0
    %511 = vmatprep.subr.bf16.mxu0 0
    %512 = vmatpush1.bf16.msra.mxu0 0
    %513 = vmatprep.subr.bf16.mxu0 0
    %514 = vmatpush1.bf16.msra.mxu0 0
    %515 = vmatprep.subr.bf16.mxu0 0
    %516 = vmatpush1.bf16.msra.mxu0 0
    %517 = vmatprep.subr.bf16.mxu0 0
    %518 = vmatpush1.bf16.msra.mxu0 0
    %519 = vmatprep.subr.bf16.mxu0 0
    %520 = vmatpush1.bf16.msra.mxu0 0
    %521 = vmatprep.mubr.bf16.mxu0 0
    %522 = vmatmul.mubr.bf16.gmra.mrb[0].mxu0 %v483
    %v523 = vpop.f32.mrb[0].mxu0
    %v524 = vadd.f32 0.0, %v523
    %v525 = vpop.f32.mrb[0].mxu0
    %v526 = vpop.f32.mrb[0].mxu0
    %v527 = vpop.f32.mrb[0].mxu0
    %528 = vdwg.mxu0
    %v530 = vsel %vm365, %v481, 0
    %v533 = vsel %vm485, %v364, 0
    %535 = vmatprep.subr.bf16.mxu0 0
    %536 = vmatpush1.bf16.msra.mxu0 %v533
    %537 = vmatprep.subr.bf16.mxu0 0
    %538 = vmatpush1.bf16.msra.mxu0 0
    %539 = vmatprep.subr.bf16.mxu0 0
    %540 = vmatpush1.bf16.msra.mxu0 0
    %541 = vmatprep.subr.bf16.mxu0 0
    %542 = vmatpush1.bf16.msra.mxu0 0
    %543 = vmatprep.subr.bf16.mxu0 0
    %544 = vmatpush1.bf16.msra.mxu0 0
    %545 = vmatprep.subr.bf16.mxu0 0
    %546 = vmatpush1.bf16.msra.mxu0 0
    %547 = vmatprep.subr.bf16.mxu0 0
    %548 = vmatpush1.bf16.msra.mxu0 0
    %549 = vmatprep.subr.bf16.mxu0 0
    %550 = vmatpush1.bf16.msra.mxu0 0
    %551 = vmatprep.subr.bf16.mxu0 0
    %552 = vmatpush1.bf16.msra.mxu0 0
    %553 = vmatprep.subr.bf16.mxu0 0
    %554 = vmatpush1.bf16.msra.mxu0 0
    %555 = vmatprep.subr.bf16.mxu0 0
    %556 = vmatpush1.bf16.msra.mxu0 0
    %557 = vmatprep.subr.bf16.mxu0 0
    %558 = vmatpush1.bf16.msra.mxu0 0
    %559 = vmatprep.subr.bf16.mxu0 0
    %560 = vmatpush1.bf16.msra.mxu0 0
    %561 = vmatprep.subr.bf16.mxu0 0
    %562 = vmatpush1.bf16.msra.mxu0 0
    %563 = vmatprep.subr.bf16.mxu0 0
    %564 = vmatpush1.bf16.msra.mxu0 0
    %565 = vmatprep.subr.bf16.mxu0 0
    %566 = vmatpush1.bf16.msra.mxu0 0
    %567 = vmatprep.mubr.bf16.mxu0 0
    %568 = vmatmul.mubr.bf16.gmra.mrb[0].mxu0 %v530
    %v569 = vpop.f32.mrb[0].mxu0
    %v570 = vadd.f32 0.0, %v569
    %v571 = vpop.f32.mrb[0].mxu0
    %v572 = vpop.f32.mrb[0].mxu0
    %v573 = vpop.f32.mrb[0].mxu0
    %574 = vdwg.mxu0
    %575 = vst.msk [vmem:[#allocation2] sm:$0xff] %vm365, %v524
    %576 = vst.msk [vmem:[#allocation2 + $0x8] sm:$0xff] %vm365, %v570
    %577 = vrot.lane.b32.xlu0 %v353, 120
    %v578 = vpop.permute.xlu0 %577
    %579 = vrot.lane.b32.xlu0 %v358, 120
    %v580 = vpop.permute.xlu0 %579
    %v582 = vsel %vm365, %v578, 0
    %v585 = vsel %vm365, %v580, 0
    %587 = vmatprep.subr.bf16.mxu0 0
    %588 = vmatpush1.bf16.xpose.msra.mxu0 %v585
    %589 = vmatprep.subr.bf16.mxu0 0
    %590 = vmatpush1.bf16.xpose.msra.mxu0 0
    %591 = vmatprep.subr.bf16.mxu0 0
    %592 = vmatpush1.bf16.xpose.msra.mxu0 0
    %593 = vmatprep.subr.bf16.mxu0 0
    %594 = vmatpush1.bf16.xpose.msra.mxu0 0
    %595 = vmatprep.subr.bf16.mxu0 0
    %596 = vmatpush1.bf16.xpose.msra.mxu0 0
    %597 = vmatprep.subr.bf16.mxu0 0
    %598 = vmatpush1.bf16.xpose.msra.mxu0 0
    %599 = vmatprep.subr.bf16.mxu0 0
    %600 = vmatpush1.bf16.xpose.msra.mxu0 0
    %601 = vmatprep.subr.bf16.mxu0 0
    %602 = vmatpush1.bf16.xpose.msra.mxu0 0
    %603 = vmatprep.subr.bf16.mxu0 0
    %604 = vmatpush1.bf16.xpose.msra.mxu0 0
    %605 = vmatprep.subr.bf16.mxu0 0
    %606 = vmatpush1.bf16.xpose.msra.mxu0 0
    %607 = vmatprep.subr.bf16.mxu0 0
    %608 = vmatpush1.bf16.xpose.msra.mxu0 0
    %609 = vmatprep.subr.bf16.mxu0 0
    %610 = vmatpush1.bf16.xpose.msra.mxu0 0
    %611 = vmatprep.subr.bf16.mxu0 0
    %612 = vmatpush1.bf16.xpose.msra.mxu0 0
    %613 = vmatprep.subr.bf16.mxu0 0
    %614 = vmatpush1.bf16.xpose.msra.mxu0 0
    %615 = vmatprep.subr.bf16.mxu0 0
    %616 = vmatpush1.bf16.xpose.msra.mxu0 0
    %617 = vmatprep.subr.bf16.mxu0 0
    %618 = vmatpush1.bf16.xpose.msra.mxu0 0
    %619 = vmatprep.mubr.bf16.mxu0 0
    %620 = vmatmul.mubr.bf16.gmra.mrb[0].mxu0 %v582
    %v621 = vpop.f32.mrb[0].mxu0
    %v622 = vadd.f32 0.0, %v621
    %v623 = vpop.f32.mrb[0].mxu0
    %v624 = vpop.f32.mrb[0].mxu0
    %v625 = vpop.f32.mrb[0].mxu0
    %626 = vdwg.mxu0
    %627 = vrot.lane.b32.xlu0 %v354, 120
    %v628 = vpop.permute.xlu0 %627
    %629 = vrot.lane.b32.xlu0 %v359, 120
    %v630 = vpop.permute.xlu0 %629
    %v632 = vsel %vm365, %v628, 0
    %v635 = vsel %vm365, %v630, 0
    %637 = vmatprep.subr.bf16.mxu0 0
    %638 = vmatpush1.bf16.xpose.msra.mxu0 %v635
    %639 = vmatprep.subr.bf16.mxu0 0
    %640 = vmatpush1.bf16.xpose.msra.mxu0 0
    %641 = vmatprep.subr.bf16.mxu0 0
    %642 = vmatpush1.bf16.xpose.msra.mxu0 0
    %643 = vmatprep.subr.bf16.mxu0 0
    %644 = vmatpush1.bf16.xpose.msra.mxu0 0
    %645 = vmatprep.subr.bf16.mxu0 0
    %646 = vmatpush1.bf16.xpose.msra.mxu0 0
    %647 = vmatprep.subr.bf16.mxu0 0
    %648 = vmatpush1.bf16.xpose.msra.mxu0 0
    %649 = vmatprep.subr.bf16.mxu0 0
    %650 = vmatpush1.bf16.xpose.msra.mxu0 0
    %651 = vmatprep.subr.bf16.mxu0 0
    %652 = vmatpush1.bf16.xpose.msra.mxu0 0
    %653 = vmatprep.subr.bf16.mxu0 0
    %654 = vmatpush1.bf16.xpose.msra.mxu0 0
    %655 = vmatprep.subr.bf16.mxu0 0
    %656 = vmatpush1.bf16.xpose.msra.mxu0 0
    %657 = vmatprep.subr.bf16.mxu0 0
    %658 = vmatpush1.bf16.xpose.msra.mxu0 0
    %659 = vmatprep.subr.bf16.mxu0 0
    %660 = vmatpush1.bf16.xpose.msra.mxu0 0
    %661 = vmatprep.subr.bf16.mxu0 0
    %662 = vmatpush1.bf16.xpose.msra.mxu0 0
    %663 = vmatprep.subr.bf16.mxu0 0
    %664 = vmatpush1.bf16.xpose.msra.mxu0 0
    %665 = vmatprep.subr.bf16.mxu0 0
    %666 = vmatpush1.bf16.xpose.msra.mxu0 0
    %667 = vmatprep.subr.bf16.mxu0 0
    %668 = vmatpush1.bf16.xpose.msra.mxu0 0
    %669 = vmatprep.mubr.bf16.mxu0 0
    %670 = vmatmul.mubr.bf16.gmra.mrb[0].mxu0 %v632
    %v671 = vpop.f32.mrb[0].mxu0
    %v672 = vadd.f32 0.0, %v671
    %v673 = vpop.f32.mrb[0].mxu0
    %v674 = vpop.f32.mrb[0].mxu0
    %v675 = vpop.f32.mrb[0].mxu0
    %676 = vdwg.mxu0
    %v677 = vsel %vm365, %v622, -inf
    %678 = vmax.xlane.f32.xlu0 %v677
    %v679 = vpop.xlane.xlu0 %678
    %v680 = vsel %vm365, %v672, -inf
    %681 = vmax.xlane.f32.xlu0 %v680
    %v682 = vpop.xlane.xlu0 %681
    %v683 = vsub.f32 %v622, %v679
    %v684 = vsub.f32 %v672, %v682
    %v685 = vmul.f32 %v683, 1.442695
    %v686 = vpow.pop %v685
    %v687 = vmul.f32 %v684, 1.442695
    %v688 = vpow.pop %v687
    %v689 = vsel %vm365, %v686, 0.0
    %690 = vadd.xlane.f32.xlu0 %v689
    %v691 = vpop.xlane.xlu0 %690
    %v692 = vsel %vm365, %v688, 0.0
    %693 = vadd.xlane.f32.xlu0 %v692
    %v694 = vpop.xlane.xlu0 %693
    %v695 = vrcp.pop %v691
    %v696 = vrcp.pop %v694
    %v697 = vmul.f32 %v686, %v695
    %v698 = vmul.f32 %v688, %v696
    %v699 = vpack.c.bf16 %v697, %v697
    %v700 = vpack.c.bf16 %v698, %v698
    %701 = vrot.lane.b32.xlu0 %v363, 120
    %v702 = vpop.permute.xlu0 %701
    %v704 = vsel %vm365, %v699, 0
    %v707 = vsel %vm485, %v702, 0
    %709 = vmatprep.subr.bf16.mxu0 0
    %710 = vmatpush1.bf16.msra.mxu0 %v707
    %711 = vmatprep.subr.bf16.mxu0 0
    %712 = vmatpush1.bf16.msra.mxu0 0
    %713 = vmatprep.subr.bf16.mxu0 0
    %714 = vmatpush1.bf16.msra.mxu0 0
    %715 = vmatprep.subr.bf16.mxu0 0
    %716 = vmatpush1.bf16.msra.mxu0 0
    %717 = vmatprep.subr.bf16.mxu0 0
    %718 = vmatpush1.bf16.msra.mxu0 0
    %719 = vmatprep.subr.bf16.mxu0 0
    %720 = vmatpush1.bf16.msra.mxu0 0
    %721 = vmatprep.subr.bf16.mxu0 0
    %722 = vmatpush1.bf16.msra.mxu0 0
    %723 = vmatprep.subr.bf16.mxu0 0
    %724 = vmatpush1.bf16.msra.mxu0 0
    %725 = vmatprep.subr.bf16.mxu0 0
    %726 = vmatpush1.bf16.msra.mxu0 0
    %727 = vmatprep.subr.bf16.mxu0 0
    %728 = vmatpush1.bf16.msra.mxu0 0
    %729 = vmatprep.subr.bf16.mxu0 0
    %730 = vmatpush1.bf16.msra.mxu0 0
    %731 = vmatprep.subr.bf16.mxu0 0
    %732 = vmatpush1.bf16.msra.mxu0 0
    %733 = vmatprep.subr.bf16.mxu0 0
    %734 = vmatpush1.bf16.msra.mxu0 0
    %735 = vmatprep.subr.bf16.mxu0 0
    %736 = vmatpush1.bf16.msra.mxu0 0
    %737 = vmatprep.subr.bf16.mxu0 0
    %738 = vmatpush1.bf16.msra.mxu0 0
    %739 = vmatprep.subr.bf16.mxu0 0
    %740 = vmatpush1.bf16.msra.mxu0 0
    %741 = vmatprep.mubr.bf16.mxu0 0
    %742 = vmatmul.mubr.bf16.gmra.mrb[0].mxu0 %v704
    %v743 = vpop.f32.mrb[0].mxu0
    %v744 = vadd.f32 0.0, %v743
    %v745 = vpop.f32.mrb[0].mxu0
    %v746 = vpop.f32.mrb[0].mxu0
    %v747 = vpop.f32.mrb[0].mxu0
    %748 = vdwg.mxu0
    %749 = vrot.lane.b32.xlu0 %v364, 120
    %v750 = vpop.permute.xlu0 %749
    %v752 = vsel %vm365, %v700, 0
    %v755 = vsel %vm485, %v750, 0
    %757 = vmatprep.subr.bf16.mxu0 0
    %758 = vmatpush1.bf16.msra.mxu0 %v755
    %759 = vmatprep.subr.bf16.mxu0 0
    %760 = vmatpush1.bf16.msra.mxu0 0
    %761 = vmatprep.subr.bf16.mxu0 0
    %762 = vmatpush1.bf16.msra.mxu0 0
    %763 = vmatprep.subr.bf16.mxu0 0
    %764 = vmatpush1.bf16.msra.mxu0 0
    %765 = vmatprep.subr.bf16.mxu0 0
    %766 = vmatpush1.bf16.msra.mxu0 0
    %767 = vmatprep.subr.bf16.mxu0 0
    %768 = vmatpush1.bf16.msra.mxu0 0
    %769 = vmatprep.subr.bf16.mxu0 0
    %770 = vmatpush1.bf16.msra.mxu0 0
    %771 = vmatprep.subr.bf16.mxu0 0
    %772 = vmatpush1.bf16.msra.mxu0 0
    %773 = vmatprep.subr.bf16.mxu0 0
    %774 = vmatpush1.bf16.msra.mxu0 0
    %775 = vmatprep.subr.bf16.mxu0 0
    %776 = vmatpush1.bf16.msra.mxu0 0
    %777 = vmatprep.subr.bf16.mxu0 0
    %778 = vmatpush1.bf16.msra.mxu0 0
    %779 = vmatprep.subr.bf16.mxu0 0
    %780 = vmatpush1.bf16.msra.mxu0 0
    %781 = vmatprep.subr.bf16.mxu0 0
    %782 = vmatpush1.bf16.msra.mxu0 0
    %783 = vmatprep.subr.bf16.mxu0 0
    %784 = vmatpush1.bf16.msra.mxu0 0
    %785 = vmatprep.subr.bf16.mxu0 0
    %786 = vmatpush1.bf16.msra.mxu0 0
    %787 = vmatprep.subr.bf16.mxu0 0
    %788 = vmatpush1.bf16.msra.mxu0 0
    %789 = vmatprep.mubr.bf16.mxu0 0
    %790 = vmatmul.mubr.bf16.gmra.mrb[0].mxu0 %v752
    %v791 = vpop.f32.mrb[0].mxu0
    %v792 = vadd.f32 0.0, %v791
    %v793 = vpop.f32.mrb[0].mxu0
    %v794 = vpop.f32.mrb[0].mxu0
    %v795 = vpop.f32.mrb[0].mxu0
    %796 = vdwg.mxu0
    %799 = vrot.lane.b32.xlu0 %v744, 8
    %v800 = vpop.permute.xlu0 %799
    %801 = vrot.lane.b32.xlu0 %v792, 8
    %v802 = vpop.permute.xlu0 %801
    %vm805 = vcmask 130112
    %806 = vst.msk [vmem:[#allocation2] sm:$0xff] %vm805, %v800
    %807 = vst.msk [vmem:[#allocation2 + $0x8] sm:$0xff] %vm805, %v802
    %808 = vrot.lane.b32.xlu0 %v353, 112
    %v809 = vpop.permute.xlu0 %808
    %810 = vrot.lane.b32.xlu0 %v358, 112
    %v811 = vpop.permute.xlu0 %810
    %v813 = vsel %vm365, %v809, 0
    %v816 = vsel %vm365, %v811, 0
    %818 = vmatprep.subr.bf16.mxu0 0
    %819 = vmatpush1.bf16.xpose.msra.mxu0 %v816
    %820 = vmatprep.subr.bf16.mxu0 0
    %821 = vmatpush1.bf16.xpose.msra.mxu0 0
    %822 = vmatprep.subr.bf16.mxu0 0
    %823 = vmatpush1.bf16.xpose.msra.mxu0 0
    %824 = vmatprep.subr.bf16.mxu0 0
    %825 = vmatpush1.bf16.xpose.msra.mxu0 0
    %826 = vmatprep.subr.bf16.mxu0 0
    %827 = vmatpush1.bf16.xpose.msra.mxu0 0
    %828 = vmatprep.subr.bf16.mxu0 0
    %829 = vmatpush1.bf16.xpose.msra.mxu0 0
    %830 = vmatprep.subr.bf16.mxu0 0
    %831 = vmatpush1.bf16.xpose.msra.mxu0 0
    %832 = vmatprep.subr.bf16.mxu0 0
    %833 = vmatpush1.bf16.xpose.msra.mxu0 0
    %834 = vmatprep.subr.bf16.mxu0 0
    %835 = vmatpush1.bf16.xpose.msra.mxu0 0
    %836 = vmatprep.subr.bf16.mxu0 0
    %837 = vmatpush1.bf16.xpose.msra.mxu0 0
    %838 = vmatprep.subr.bf16.mxu0 0
    %839 = vmatpush1.bf16.xpose.msra.mxu0 0
    %840 = vmatprep.subr.bf16.mxu0 0
    %841 = vmatpush1.bf16.xpose.msra.mxu0 0
    %842 = vmatprep.subr.bf16.mxu0 0
    %843 = vmatpush1.bf16.xpose.msra.mxu0 0
    %844 = vmatprep.subr.bf16.mxu0 0
    %845 = vmatpush1.bf16.xpose.msra.mxu0 0
    %846 = vmatprep.subr.bf16.mxu0 0
    %847 = vmatpush1.bf16.xpose.msra.mxu0 0
    %848 = vmatprep.subr.bf16.mxu0 0
    %849 = vmatpush1.bf16.xpose.msra.mxu0 0
    %850 = vmatprep.mubr.bf16.mxu0 0
    %851 = vmatmul.mubr.bf16.gmra.mrb[0].mxu0 %v813
    %v852 = vpop.f32.mrb[0].mxu0
    %v853 = vadd.f32 0.0, %v852
    %v854 = vpop.f32.mrb[0].mxu0
    %v855 = vpop.f32.mrb[0].mxu0
    %v856 = vpop.f32.mrb[0].mxu0
    %857 = vdwg.mxu0
    %858 = vrot.lane.b32.xlu0 %v354, 112
    %v859 = vpop.permute.xlu0 %858
    %860 = vrot.lane.b32.xlu0 %v359, 112
    %v861 = vpop.permute.xlu0 %860
    %v863 = vsel %vm365, %v859, 0
    %v866 = vsel %vm365, %v861, 0
    %868 = vmatprep.subr.bf16.mxu0 0
    %869 = vmatpush1.bf16.xpose.msra.mxu0 %v866
    %870 = vmatprep.subr.bf16.mxu0 0
    %871 = vmatpush1.bf16.xpose.msra.mxu0 0
    %872 = vmatprep.subr.bf16.mxu0 0
    %873 = vmatpush1.bf16.xpose.msra.mxu0 0
    %874 = vmatprep.subr.bf16.mxu0 0
    %875 = vmatpush1.bf16.xpose.msra.mxu0 0
    %876 = vmatprep.subr.bf16.mxu0 0
    %877 = vmatpush1.bf16.xpose.msra.mxu0 0
    %878 = vmatprep.subr.bf16.mxu0 0
    %879 = vmatpush1.bf16.xpose.msra.mxu0 0
    %880 = vmatprep.subr.bf16.mxu0 0
    %881 = vmatpush1.bf16.xpose.msra.mxu0 0
    %882 = vmatprep.subr.bf16.mxu0 0
    %883 = vmatpush1.bf16.xpose.msra.mxu0 0
    %884 = vmatprep.subr.bf16.mxu0 0
    %885 = vmatpush1.bf16.xpose.msra.mxu0 0
    %886 = vmatprep.subr.bf16.mxu0 0
    %887 = vmatpush1.bf16.xpose.msra.mxu0 0
    %888 = vmatprep.subr.bf16.mxu0 0
    %889 = vmatpush1.bf16.xpose.msra.mxu0 0
    %890 = vmatprep.subr.bf16.mxu0 0
    %891 = vmatpush1.bf16.xpose.msra.mxu0 0
    %892 = vmatprep.subr.bf16.mxu0 0
    %893 = vmatpush1.bf16.xpose.msra.mxu0 0
    %894 = vmatprep.subr.bf16.mxu0 0
    %895 = vmatpush1.bf16.xpose.msra.mxu0 0
    %896 = vmatprep.subr.bf16.mxu0 0
    %897 = vmatpush1.bf16.xpose.msra.mxu0 0
    %898 = vmatprep.subr.bf16.mxu0 0
    %899 = vmatpush1.bf16.xpose.msra.mxu0 0
    %900 = vmatprep.mubr.bf16.mxu0 0
    %901 = vmatmul.mubr.bf16.gmra.mrb[0].mxu0 %v863
    %v902 = vpop.f32.mrb[0].mxu0
    %v903 = vadd.f32 0.0, %v902
    %v904 = vpop.f32.mrb[0].mxu0
    %v905 = vpop.f32.mrb[0].mxu0
    %v906 = vpop.f32.mrb[0].mxu0
    %907 = vdwg.mxu0
    %v908 = vsel %vm365, %v853, -inf
    %909 = vmax.xlane.f32.xlu0 %v908
    %v910 = vpop.xlane.xlu0 %909
    %v911 = vsel %vm365, %v903, -inf
    %912 = vmax.xlane.f32.xlu0 %v911
    %v913 = vpop.xlane.xlu0 %912
    %v914 = vsub.f32 %v853, %v910
    %v915 = vsub.f32 %v903, %v913
    %v916 = vmul.f32 %v914, 1.442695
    %v917 = vpow.pop %v916
    %v918 = vmul.f32 %v915, 1.442695
    %v919 = vpow.pop %v918
    %v920 = vsel %vm365, %v917, 0.0
    %921 = vadd.xlane.f32.xlu0 %v920
    %v922 = vpop.xlane.xlu0 %921
    %v923 = vsel %vm365, %v919, 0.0
    %924 = vadd.xlane.f32.xlu0 %v923
    %v925 = vpop.xlane.xlu0 %924
    %v926 = vrcp.pop %v922
    %v927 = vrcp.pop %v925
    %v928 = vmul.f32 %v917, %v926
    %v929 = vmul.f32 %v919, %v927
    %v930 = vpack.c.bf16 %v928, %v928
    %v931 = vpack.c.bf16 %v929, %v929
    %932 = vrot.lane.b32.xlu0 %v363, 112
    %v933 = vpop.permute.xlu0 %932
    %v935 = vsel %vm365, %v930, 0
    %v938 = vsel %vm485, %v933, 0
    %940 = vmatprep.subr.bf16.mxu0 0
    %941 = vmatpush1.bf16.msra.mxu0 %v938
    %942 = vmatprep.subr.bf16.mxu0 0
    %943 = vmatpush1.bf16.msra.mxu0 0
    %944 = vmatprep.subr.bf16.mxu0 0
    %945 = vmatpush1.bf16.msra.mxu0 0
    %946 = vmatprep.subr.bf16.mxu0 0
    %947 = vmatpush1.bf16.msra.mxu0 0
    %948 = vmatprep.subr.bf16.mxu0 0
    %949 = vmatpush1.bf16.msra.mxu0 0
    %950 = vmatprep.subr.bf16.mxu0 0
    %951 = vmatpush1.bf16.msra.mxu0 0
    %952 = vmatprep.subr.bf16.mxu0 0
    %953 = vmatpush1.bf16.msra.mxu0 0
    %954 = vmatprep.subr.bf16.mxu0 0
    %955 = vmatpush1.bf16.msra.mxu0 0
    %956 = vmatprep.subr.bf16.mxu0 0
    %957 = vmatpush1.bf16.msra.mxu0 0
    %958 = vmatprep.subr.bf16.mxu0 0
    %959 = vmatpush1.bf16.msra.mxu0 0
    %960 = vmatprep.subr.bf16.mxu0 0
    %961 = vmatpush1.bf16.msra.mxu0 0
    %962 = vmatprep.subr.bf16.mxu0 0
    %963 = vmatpush1.bf16.msra.mxu0 0
    %964 = vmatprep.subr.bf16.mxu0 0
    %965 = vmatpush1.bf16.msra.mxu0 0
    %966 = vmatprep.subr.bf16.mxu0 0
    %967 = vmatpush1.bf16.msra.mxu0 0
    %968 = vmatprep.subr.bf16.mxu0 0
    %969 = vmatpush1.bf16.msra.mxu0 0
    %970 = vmatprep.subr.bf16.mxu0 0
    %971 = vmatpush1.bf16.msra.mxu0 0
    %972 = vmatprep.mubr.bf16.mxu0 0
    %973 = vmatmul.mubr.bf16.gmra.mrb[0].mxu0 %v935
    %v974 = vpop.f32.mrb[0].mxu0
    %v975 = vadd.f32 0.0, %v974
    %v976 = vpop.f32.mrb[0].mxu0
    %v977 = vpop.f32.mrb[0].mxu0
    %v978 = vpop.f32.mrb[0].mxu0
    %979 = vdwg.mxu0
    %980 = vrot.lane.b32.xlu0 %v364, 112
    %v981 = vpop.permute.xlu0 %980
    %v983 = vsel %vm365, %v931, 0
    %v986 = vsel %vm485, %v981, 0
    %988 = vmatprep.subr.bf16.mxu0 0
    %989 = vmatpush1.bf16.msra.mxu0 %v986
    %990 = vmatprep.subr.bf16.mxu0 0
    %991 = vmatpush1.bf16.msra.mxu0 0
    %992 = vmatprep.subr.bf16.mxu0 0
    %993 = vmatpush1.bf16.msra.mxu0 0
    %994 = vmatprep.subr.bf16.mxu0 0
    %995 = vmatpush1.bf16.msra.mxu0 0
    %996 = vmatprep.subr.bf16.mxu0 0
    %997 = vmatpush1.bf16.msra.mxu0 0
    %998 = vmatprep.subr.bf16.mxu0 0
    %999 = vmatpush1.bf16.msra.mxu0 0
    %1000 = vmatprep.subr.bf16.mxu0 0
    %1001 = vmatpush1.bf16.msra.mxu0 0
    %1002 = vmatprep.subr.bf16.mxu0 0
    %1003 = vmatpush1.bf16.msra.mxu0 0
    %1004 = vmatprep.subr.bf16.mxu0 0
    %1005 = vmatpush1.bf16.msra.mxu0 0
    %1006 = vmatprep.subr.bf16.mxu0 0
    %1007 = vmatpush1.bf16.msra.mxu0 0
    %1008 = vmatprep.subr.bf16.mxu0 0
    %1009 = vmatpush1.bf16.msra.mxu0 0
    %1010 = vmatprep.subr.bf16.mxu0 0
    %1011 = vmatpush1.bf16.msra.mxu0 0
    %1012 = vmatprep.subr.bf16.mxu0 0
    %1013 = vmatpush1.bf16.msra.mxu0 0
    %1014 = vmatprep.subr.bf16.mxu0 0
    %1015 = vmatpush1.bf16.msra.mxu0 0
    %1016 = vmatprep.subr.bf16.mxu0 0
    %1017 = vmatpush1.bf16.msra.mxu0 0
    %1018 = vmatprep.subr.bf16.mxu0 0
    %1019 = vmatpush1.bf16.msra.mxu0 0
    %1020 = vmatprep.mubr.bf16.mxu0 0
    %1021 = vmatmul.mubr.bf16.gmra.mrb[0].mxu0 %v983
    %v1022 = vpop.f32.mrb[0].mxu0
    %v1023 = vadd.f32 0.0, %v1022
    %v1024 = vpop.f32.mrb[0].mxu0
    %v1025 = vpop.f32.mrb[0].mxu0
    %v1026 = vpop.f32.mrb[0].mxu0
    %1027 = vdwg.mxu0
    %1030 = vrot.lane.b32.xlu0 %v975, 16
    %v1031 = vpop.permute.xlu0 %1030
    %1032 = vrot.lane.b32.xlu0 %v1023, 16
    %v1033 = vpop.permute.xlu0 %1032
    %vm1036 = vcmask 195712
    %1037 = vst.msk [vmem:[#allocation2] sm:$0xff] %vm1036, %v1031
    %1038 = vst.msk [vmem:[#allocation2 + $0x8] sm:$0xff] %vm1036, %v1033
    %1039 = vrot.lane.b32.xlu0 %v353, 104
    %v1040 = vpop.permute.xlu0 %1039
    %1041 = vrot.lane.b32.xlu0 %v358, 104
    %v1042 = vpop.permute.xlu0 %1041
    %v1044 = vsel %vm365, %v1040, 0
    %v1047 = vsel %vm365, %v1042, 0
    %1049 = vmatprep.subr.bf16.mxu0 0
    %1050 = vmatpush1.bf16.xpose.msra.mxu0 %v1047
    %1051 = vmatprep.subr.bf16.mxu0 0
    %1052 = vmatpush1.bf16.xpose.msra.mxu0 0
    %1053 = vmatprep.subr.bf16.mxu0 0
    %1054 = vmatpush1.bf16.xpose.msra.mxu0 0
    %1055 = vmatprep.subr.bf16.mxu0 0
    %1056 = vmatpush1.bf16.xpose.msra.mxu0 0
    %1057 = vmatprep.subr.bf16.mxu0 0
    %1058 = vmatpush1.bf16.xpose.msra.mxu0 0
    %1059 = vmatprep.subr.bf16.mxu0 0
    %1060 = vmatpush1.bf16.xpose.msra.mxu0 0
    %1061 = vmatprep.subr.bf16.mxu0 0
    %1062 = vmatpush1.bf16.xpose.msra.mxu0 0
    %1063 = vmatprep.subr.bf16.mxu0 0
    %1064 = vmatpush1.bf16.xpose.msra.mxu0 0
    %1065 = vmatprep.subr.bf16.mxu0 0
    %1066 = vmatpush1.bf16.xpose.msra.mxu0 0
    %1067 = vmatprep.subr.bf16.mxu0 0
    %1068 = vmatpush1.bf16.xpose.msra.mxu0 0
    %1069 = vmatprep.subr.bf16.mxu0 0
    %1070 = vmatpush1.bf16.xpose.msra.mxu0 0
    %1071 = vmatprep.subr.bf16.mxu0 0
    %1072 = vmatpush1.bf16.xpose.msra.mxu0 0
    %1073 = vmatprep.subr.bf16.mxu0 0
    %1074 = vmatpush1.bf16.xpose.msra.mxu0 0
    %1075 = vmatprep.subr.bf16.mxu0 0
    %1076 = vmatpush1.bf16.xpose.msra.mxu0 0
    %1077 = vmatprep.subr.bf16.mxu0 0
    %1078 = vmatpush1.bf16.xpose.msra.mxu0 0
    %1079 = vmatprep.subr.bf16.mxu0 0
    %1080 = vmatpush1.bf16.xpose.msra.mxu0 0
    %1081 = vmatprep.mubr.bf16.mxu0 0
    %1082 = vmatmul.mubr.bf16.gmra.mrb[0].mxu0 %v1044
    %v1083 = vpop.f32.mrb[0].mxu0
    %v1084 = vadd.f32 0.0, %v1083
    %v1085 = vpop.f32.mrb[0].mxu0
    %v1086 = vpop.f32.mrb[0].mxu0
    %v1087 = vpop.f32.mrb[0].mxu0
    %1088 = vdwg.mxu0
    %1089 = vrot.lane.b32.xlu0 %v354, 104
    %v1090 = vpop.permute.xlu0 %1089
    %1091 = vrot.lane.b32.xlu0 %v359, 104
    %v1092 = vpop.permute.xlu0 %1091
    %v1094 = vsel %vm365, %v1090, 0
    %v1097 = vsel %vm365, %v1092, 0
    %1099 = vmatprep.subr.bf16.mxu0 0
    %1100 = vmatpush1.bf16.xpose.msra.mxu0 %v1097
    %1101 = vmatprep.subr.bf16.mxu0 0
    %1102 = vmatpush1.bf16.xpose.msra.mxu0 0
    %1103 = vmatprep.subr.bf16.mxu0 0
    %1104 = vmatpush1.bf16.xpose.msra.mxu0 0
    %1105 = vmatprep.subr.bf16.mxu0 0
    %1106 = vmatpush1.bf16.xpose.msra.mxu0 0
    %1107 = vmatprep.subr.bf16.mxu0 0
    %1108 = vmatpush1.bf16.xpose.msra.mxu0 0
    %1109 = vmatprep.subr.bf16.mxu0 0
    %1110 = vmatpush1.bf16.xpose.msra.mxu0 0
    %1111 = vmatprep.subr.bf16.mxu0 0
    %1112 = vmatpush1.bf16.xpose.msra.mxu0 0
    %1113 = vmatprep.subr.bf16.mxu0 0
    %1114 = vmatpush1.bf16.xpose.msra.mxu0 0
    %1115 = vmatprep.subr.bf16.mxu0 0
    %1116 = vmatpush1.bf16.xpose.msra.mxu0 0
    %1117 = vmatprep.subr.bf16.mxu0 0
    %1118 = vmatpush1.bf16.xpose.msra.mxu0 0
    %1119 = vmatprep.subr.bf16.mxu0 0
    %1120 = vmatpush1.bf16.xpose.msra.mxu0 0
    %1121 = vmatprep.subr.bf16.mxu0 0
    %1122 = vmatpush1.bf16.xpose.msra.mxu0 0
    %1123 = vmatprep.subr.bf16.mxu0 0
    %1124 = vmatpush1.bf16.xpose.msra.mxu0 0
    %1125 = vmatprep.subr.bf16.mxu0 0
    %1126 = vmatpush1.bf16.xpose.msra.mxu0 0
    %1127 = vmatprep.subr.bf16.mxu0 0
    %1128 = vmatpush1.bf16.xpose.msra.mxu0 0
    %1129 = vmatprep.subr.bf16.mxu0 0
    %1130 = vmatpush1.bf16.xpose.msra.mxu0 0
    %1131 = vmatprep.mubr.bf16.mxu0 0
    %1132 = vmatmul.mubr.bf16.gmra.mrb[0].mxu0 %v1094
    %v1133 = vpop.f32.mrb[0].mxu0
    %v1134 = vadd.f32 0.0, %v1133
    %v1135 = vpop.f32.mrb[0].mxu0
    %v1136 = vpop.f32.mrb[0].mxu0
    %v1137 = vpop.f32.mrb[0].mxu0
    %1138 = vdwg.mxu0
    %v1139 = vsel %vm365, %v1084, -inf
    %1140 = vmax.xlane.f32.xlu0 %v1139
    %v1141 = vpop.xlane.xlu0 %1140
    %v1142 = vsel %vm365, %v1134, -inf
    %1143 = vmax.xlane.f32.xlu0 %v1142
    %v1144 = vpop.xlane.xlu0 %1143
    %v1145 = vsub.f32 %v1084, %v1141
    %v1146 = vsub.f32 %v1134, %v1144
    %v1147 = vmul.f32 %v1145, 1.442695
    %v1148 = vpow.pop %v1147
    %v1149 = vmul.f32 %v1146, 1.442695
    %v1150 = vpow.pop %v1149
    %v1151 = vsel %vm365, %v1148, 0.0
    %1152 = vadd.xlane.f32.xlu0 %v1151
    %v1153 = vpop.xlane.xlu0 %1152
    %v1154 = vsel %vm365, %v1150, 0.0
    %1155 = vadd.xlane.f32.xlu0 %v1154
    %v1156 = vpop.xlane.xlu0 %1155
    %v1157 = vrcp.pop %v1153
    %v1158 = vrcp.pop %v1156
    %v1159 = vmul.f32 %v1148, %v1157
    %v1160 = vmul.f32 %v1150, %v1158
    %v1161 = vpack.c.bf16 %v1159, %v1159
    %v1162 = vpack.c.bf16 %v1160, %v1160
    %1163 = vrot.lane.b32.xlu0 %v363, 104
    %v1164 = vpop.permute.xlu0 %1163
    %v1166 = vsel %vm365, %v1161, 0
    %v1169 = vsel %vm485, %v1164, 0
    %1171 = vmatprep.subr.bf16.mxu0 0
    %1172 = vmatpush1.bf16.msra.mxu0 %v1169
    %1173 = vmatprep.subr.bf16.mxu0 0
    %1174 = vmatpush1.bf16.msra.mxu0 0
    %1175 = vmatprep.subr.bf16.mxu0 0
    %1176 = vmatpush1.bf16.msra.mxu0 0
    %1177 = vmatprep.subr.bf16.mxu0 0
    %1178 = vmatpush1.bf16.msra.mxu0 0
    %1179 = vmatprep.subr.bf16.mxu0 0
    %1180 = vmatpush1.bf16.msra.mxu0 0
    %1181 = vmatprep.subr.bf16.mxu0 0
    %1182 = vmatpush1.bf16.msra.mxu0 0
    %1183 = vmatprep.subr.bf16.mxu0 0
    %1184 = vmatpush1.bf16.msra.mxu0 0
    %1185 = vmatprep.subr.bf16.mxu0 0
    %1186 = vmatpush1.bf16.msra.mxu0 0
    %1187 = vmatprep.subr.bf16.mxu0 0
    %1188 = vmatpush1.bf16.msra.mxu0 0
    %1189 = vmatprep.subr.bf16.mxu0 0
    %1190 = vmatpush1.bf16.msra.mxu0 0
    %1191 = vmatprep.subr.bf16.mxu0 0
    %1192 = vmatpush1.bf16.msra.mxu0 0
    %1193 = vmatprep.subr.bf16.mxu0 0
    %1194 = vmatpush1.bf16.msra.mxu0 0
    %1195 = vmatprep.subr.bf16.mxu0 0
    %1196 = vmatpush1.bf16.msra.mxu0 0
    %1197 = vmatprep.subr.bf16.mxu0 0
    %1198 = vmatpush1.bf16.msra.mxu0 0
    %1199 = vmatprep.subr.bf16.mxu0 0
    %1200 = vmatpush1.bf16.msra.mxu0 0
    %1201 = vmatprep.subr.bf16.mxu0 0
    %1202 = vmatpush1.bf16.msra.mxu0 0
    %1203 = vmatprep.mubr.bf16.mxu0 0
    %1204 = vmatmul.mubr.bf16.gmra.mrb[0].mxu0 %v1166
    %v1205 = vpop.f32.mrb[0].mxu0
    %v1206 = vadd.f32 0.0, %v1205
    %v1207 = vpop.f32.mrb[0].mxu0
    %v1208 = vpop.f32.mrb[0].mxu0
    %v1209 = vpop.f32.mrb[0].mxu0
    %1210 = vdwg.mxu0
    %1211 = vrot.lane.b32.xlu0 %v364, 104
    %v1212 = vpop.permute.xlu0 %1211
    %v1214 = vsel %vm365, %v1162, 0
    %v1217 = vsel %vm485, %v1212, 0
    %1219 = vmatprep.subr.bf16.mxu0 0
    %1220 = vmatpush1.bf16.msra.mxu0 %v1217
    %1221 = vmatprep.subr.bf16.mxu0 0
    %1222 = vmatpush1.bf16.msra.mxu0 0
    %1223 = vmatprep.subr.bf16.mxu0 0
    %1224 = vmatpush1.bf16.msra.mxu0 0
    %1225 = vmatprep.subr.bf16.mxu0 0
    %1226 = vmatpush1.bf16.msra.mxu0 0
    %1227 = vmatprep.subr.bf16.mxu0 0
    %1228 = vmatpush1.bf16.msra.mxu0 0
    %1229 = vmatprep.subr.bf16.mxu0 0
    %1230 = vmatpush1.bf16.msra.mxu0 0
    %1231 = vmatprep.subr.bf16.mxu0 0
    %1232 = vmatpush1.bf16.msra.mxu0 0
    %1233 = vmatprep.subr.bf16.mxu0 0
    %1234 = vmatpush1.bf16.msra.mxu0 0
    %1235 = vmatprep.subr.bf16.mxu0 0
    %1236 = vmatpush1.bf16.msra.mxu0 0
    %1237 = vmatprep.subr.bf16.mxu0 0
    %1238 = vmatpush1.bf16.msra.mxu0 0
    %1239 = vmatprep.subr.bf16.mxu0 0
    %1240 = vmatpush1.bf16.msra.mxu0 0
    %1241 = vmatprep.subr.bf16.mxu0 0
    %1242 = vmatpush1.bf16.msra.mxu0 0
    %1243 = vmatprep.subr.bf16.mxu0 0
    %1244 = vmatpush1.bf16.msra.mxu0 0
    %1245 = vmatprep.subr.bf16.mxu0 0
    %1246 = vmatpush1.bf16.msra.mxu0 0
    %1247 = vmatprep.subr.bf16.mxu0 0
    %1248 = vmatpush1.bf16.msra.mxu0 0
    %1249 = vmatprep.subr.bf16.mxu0 0
    %1250 = vmatpush1.bf16.msra.mxu0 0
    %1251 = vmatprep.mubr.bf16.mxu0 0
    %1252 = vmatmul.mubr.bf16.gmra.mrb[0].mxu0 %v1214
    %v1253 = vpop.f32.mrb[0].mxu0
    %v1254 = vadd.f32 0.0, %v1253
    %v1255 = vpop.f32.mrb[0].mxu0
    %v1256 = vpop.f32.mrb[0].mxu0
    %v1257 = vpop.f32.mrb[0].mxu0
    %1258 = vdwg.mxu0
    %1261 = vrot.lane.b32.xlu0 %v1206, 24
    %v1262 = vpop.permute.xlu0 %1261
    %1263 = vrot.lane.b32.xlu0 %v1254, 24
    %v1264 = vpop.permute.xlu0 %1263
    %vm1267 = vcmask 261312
    %1268 = vst.msk [vmem:[#allocation2] sm:$0xff] %vm1267, %v1262
    %1269 = vst.msk [vmem:[#allocation2 + $0x8] sm:$0xff] %vm1267, %v1264
    %v1270 = vld [vmem:[#allocation2] sm:$0xff]
    %v1271 = vld [vmem:[#allocation2 + $0x8] sm:$0xff]
    %v1272 = vpack.c.bf16 %v1271, %v1270
    %v1273 = vld [vmem:[#allocation12] sm:$0xf]
    %v1274 = vld [vmem:[#allocation12 + $0x4] sm:$0xf]
    %v1275 = vld [vmem:[#allocation12 + $0x8] sm:$0xf]
    %v1276 = vld [vmem:[#allocation12 + $0xc] sm:$0xf]
    %v1277 = vld [vmem:[%s10] sm:$0x1]
    %v1279 = vlaneseq
    %v1280 = vshrl.u32 %v1279, 7
    %v1281 = vsub.s32 0, %v1280
    %v1282 = vrot.slane %v1277, %v1281
    %v1288 = vunpack.c.l.b16 %v1273
    %v1289 = vunpack.c.l.b16 %v1274
    %v1290 = vunpack.c.l.b16 %v1275
    %v1291 = vunpack.c.l.b16 %v1276
    %v1292 = vpack.c.b16 %v1289, %v1288
    %v1293 = vpack.c.b16 %v1291, %v1290
    %v1295 = vsel %vm152, %v1272, 0
    %v1298 = vsel %vm152, %v1292, 0
    %v1301 = vsel %vm152, %v1293, 0
    %1303 = vmatprep.subr.bf16.mxu0 0
    %1304 = vmatpush1.bf16.xpose.msra.mxu0 %v1298
    %1305 = vmatprep.subr.bf16.mxu0 0
    %1306 = vmatpush1.bf16.xpose.msra.mxu0 %v1301
    %1307 = vmatprep.subr.bf16.mxu0 0
    %1308 = vmatpush1.bf16.xpose.msra.mxu0 0
    %1309 = vmatprep.subr.bf16.mxu0 0
    %1310 = vmatpush1.bf16.xpose.msra.mxu0 0
    %1311 = vmatprep.subr.bf16.mxu0 0
    %1312 = vmatpush1.bf16.xpose.msra.mxu0 0
    %1313 = vmatprep.subr.bf16.mxu0 0
    %1314 = vmatpush1.bf16.xpose.msra.mxu0 0
    %1315 = vmatprep.subr.bf16.mxu0 0
    %1316 = vmatpush1.bf16.xpose.msra.mxu0 0
    %1317 = vmatprep.subr.bf16.mxu0 0
    %1318 = vmatpush1.bf16.xpose.msra.mxu0 0
    %1319 = vmatprep.subr.bf16.mxu0 0
    %1320 = vmatpush1.bf16.xpose.msra.mxu0 0
    %1321 = vmatprep.subr.bf16.mxu0 0
    %1322 = vmatpush1.bf16.xpose.msra.mxu0 0
    %1323 = vmatprep.subr.bf16.mxu0 0
    %1324 = vmatpush1.bf16.xpose.msra.mxu0 0
    %1325 = vmatprep.subr.bf16.mxu0 0
    %1326 = vmatpush1.bf16.xpose.msra.mxu0 0
    %1327 = vmatprep.subr.bf16.mxu0 0
    %1328 = vmatpush1.bf16.xpose.msra.mxu0 0
    %1329 = vmatprep.subr.bf16.mxu0 0
    %1330 = vmatpush1.bf16.xpose.msra.mxu0 0
    %1331 = vmatprep.subr.bf16.mxu0 0
    %1332 = vmatpush1.bf16.xpose.msra.mxu0 0
    %1333 = vmatprep.subr.bf16.mxu0 0
    %1334 = vmatpush1.bf16.xpose.msra.mxu0 0
    %1335 = vmatprep.mubr.bf16.mxu0 0
    %1336 = vmatmul.mubr.bf16.gmra.mrb[0].mxu0 %v1295
    %v1337 = vpop.f32.mrb[0].mxu0
    %v1338 = vadd.f32 %v1282, %v1337
    %v1339 = vpop.f32.mrb[0].mxu0
    %v1340 = vpop.f32.mrb[0].mxu0
    %v1341 = vadd.f32 %v1282, %v1340
    %v1342 = vpop.f32.mrb[0].mxu0
    %1343 = vdwg.mxu0
    %1344 = vst.msk [vmem:[#allocation14] sm:$0xff] %vm152, %v1338
    %1345 = vst.msk [vmem:[#allocation14 + $0x8] sm:$0xff] %vm152, %v1341
    // Predicated region
    $region70: #{tpu_custom_call.1} parent=1 // pred_check
      _
    $region71: #{tpu_custom_call.1} parent=1 // pred_check_branch
      %1347 = sbr.rel (0) target = $region73
    $region72: #{tpu_custom_call.1} parent=1 // pred_region
      %s1349 = ssub.s32 256, 256
      %1350 = vsyncadd [#allocation5], %s1349
      %s1351 = sshll.u32 [#allocation14], 4
      %s1352 = int_to_ptr.vmem [resolvable:$true] %s1351
      %1357 = dma.vmem_to_hbm [thread:$0]  %s1352, 256, %s11, [#allocation5], 128, 128, 8
    $region73: #{tpu_custom_call.1} parent=1 // pred_fallthru
      _
    // Predicated region
    $region74: #{tpu_custom_call.1} parent=1 // pred_check
      _
    $region75: #{tpu_custom_call.1} parent=1 // pred_check_branch
      %1359 = sbr.rel (0) target = $region77
    $region76: #{tpu_custom_call.1} parent=1 // pred_region
      %1360 = dma.done [#allocation5], 256
    $region77: #{tpu_custom_call.1} parent=1 // pred_fallthru
      _
    %1361 = vsyncpa [#allocation4], 1
    %1362 = vsyncpa [#allocation7], 1
    %1363 = vsyncpa [#allocation10], 1
    %1364 = vsyncpa [#allocation13], 1
    %1365 = vsyncpa [#allocation5], 1

</llo_original>
